<compile_context>
chip_gen: v7x
topology: tpu7x:2x2x1
jax: 0.10.0
libtpu: 0.0.40
codegen_flags: <defaults>
</compile_context>

<pallas_src>
import functools

import jax
import jax.numpy as jnp
from jax.experimental import pallas as pl
from jax.experimental.pallas import tpu as pltpu


def _round_up(x, m):
    return ((x + m - 1) // m) * m


def _vmem_capacity_bytes():
    """Generation-aware VMEM capacity (v5e/v6e: 128 MiB, v7x: 64 MiB per TensorCore)."""
    try:
        return int(pltpu.get_tpu_info().vmem_capacity_bytes)
    except Exception:
        return 64 * 1024 * 1024  # conservative fallback: v7x per-TC VMEM


def _clamp_vmem_limit(est_bytes, vmem_cap):
    est = int(est_bytes) + 4 * 1024 * 1024                # compiler-scratch headroom
    return int(max(8 * 1024 * 1024, min(est, vmem_cap - 2 * 1024 * 1024)))


# ---------------------------------------------------------------------------
# Kernel A: additive attention (online softmax over seq tiles) + single-step GRU
# ---------------------------------------------------------------------------
def _attn_gru_kernel(e_proj_ref, enc_ref, emb_ref, hid_ref,
                     wa_h_ref, wih_e_ref, wih_w_ref, bih_ref, whh_ref, bhh_ref,
                     hnew_ref, feat_ref,
                     hproj_sc, m_sc, l_sc, acc_sc,
                     *, s_actual, tile_s, need_mask):
    s = pl.program_id(0)
    hid = hid_ref[...]                                      # (Bp, H) f32

    @pl.when(s == 0)
    def _init():
        # decoder-hidden side of the attention projection: identical for every seq tile
        hproj_sc[...] = jnp.dot(hid.astype(jnp.bfloat16), wa_h_ref[...],
                                preferred_element_type=jnp.float32)
        m_sc[...] = jnp.full(m_sc.shape, -1e30, jnp.float32)
        l_sc[...] = jnp.zeros(l_sc.shape, jnp.float32)
        acc_sc[...] = jnp.zeros(acc_sc.shape, jnp.float32)

    # ---- online-softmax additive attention over this seq tile ----
    enc = enc_ref[...]                                      # (Bp, ts, E) f32
    energy = jnp.tanh(e_proj_ref[...] + hproj_sc[...][:, None, :])   # (Bp, ts, A)
    scores = jnp.sum(energy, axis=2)                        # (Bp, ts)
    if need_mask:   # static: only compiled when src_len was padded up to a tile multiple
        pos = s * tile_s + jax.lax.broadcasted_iota(jnp.int32, scores.shape, 1)
        scores = jnp.where(pos < s_actual, scores, -1e30)

    m_prev = m_sc[...]
    m_new = jnp.maximum(m_prev, jnp.max(scores, axis=1, keepdims=True))
    alpha = jnp.exp(m_prev - m_new)
    p = jnp.exp(scores - m_new)                             # (Bp, ts)
    l_sc[...] = alpha * l_sc[...] + jnp.sum(p, axis=1, keepdims=True)
    acc_sc[...] = alpha * acc_sc[...] + jnp.sum(p[:, :, None] * enc, axis=1)
    m_sc[...] = m_new

    # ---- last seq tile: finish softmax, one GRU step, emit h_new + bf16 feature ----
    @pl.when(s == pl.num_programs(0) - 1)
    def _finish():
        H = hid_ref.shape[1]
        emb = emb_ref[...]                                  # (Bp, EMB) f32
        weighted = acc_sc[...] / l_sc[...]                  # (Bp, E)   f32
        gx = (jnp.dot(emb.astype(jnp.bfloat16), wih_e_ref[...],
                      preferred_element_type=jnp.float32)
              + jnp.dot(weighted.astype(jnp.bfloat16), wih_w_ref[...],
                        preferred_element_type=jnp.float32)
              + bih_ref[...])
        gh = jnp.dot(hid.astype(jnp.bfloat16), whh_ref[...],
                     preferred_element_type=jnp.float32) + bhh_ref[...]
        r = jax.nn.sigmoid(gx[:, 0:H] + gh[:, 0:H])
        z = jax.nn.sigmoid(gx[:, H:2 * H] + gh[:, H:2 * H])
        n = jnp.tanh(gx[:, 2 * H:3 * H] + r * gh[:, 2 * H:3 * H])
        h_new = (1.0 - z) * n + z * hid                     # == GRU output for one step
        hnew_ref[...] = h_new
        feat_ref[...] = jnp.concatenate([h_new, weighted, emb],
                                        axis=1).astype(jnp.bfloat16)


# ---------------------------------------------------------------------------
# Kernel B: vocab-tiled projection  logits_tile = feat @ W_tile + b_tile
# ---------------------------------------------------------------------------
def _out_proj_kernel(feat_ref, w_ref, b_ref, out_ref):
    # feat: (Bp, K) bf16 resident; w: (K, tile_v) bf16 contiguous tile streamed per grid step.
    out_ref[...] = (jnp.dot(feat_ref[...], w_ref[...],
                            preferred_element_type=jnp.float32) + b_ref[...])


# ---------------------------------------------------------------------------
# One-time parameter prep (outside the per-step decode loop)
# ---------------------------------------------------------------------------
def prepare_decoder_params(params, *, max_tile_v=4096):
    vmem_cap = _vmem_capacity_bytes()
    # budget for the DOUBLE-BUFFERED bf16 W_out tile on the DMA-bound projection
    budget = min(32 * 1024 * 1024, vmem_cap // 2)

    wo = jnp.concatenate([params["wo_h"], params["wo_w"], params["wo_e"]], axis=0)  # (K, V)
    K, V = wo.shape
    tv = max_tile_v
    while tv > 128 and 2 * K * tv * 2 > budget:
        tv //= 2
    tv = max(128, min(tv, _round_up(V, 128)))
    Vp = _round_up(V, tv)
    n_tiles = Vp // tv

    wo_p = jnp.pad(wo, ((0, 0), (0, Vp - V)))
    # tile-major contiguous layout: each grid step reads one contiguous (K, tile_v) HBM slab
    w_out_tiles = jnp.transpose(wo_p.reshape(K, n_tiles, tv), (1, 0, 2)).astype(jnp.bfloat16)
    # Padded vocab columns produce logits == 0; they are sliced off in the wrapper.
    b_out = jnp.pad(params["bo"], ((0, 0), (0, Vp - V))).astype(jnp.float32)

    prepped = dict(params)
    prepped.update(
        w_out_tiles=w_out_tiles, b_out=b_out,
        tile_v=int(tv), vocab=int(V), vocab_pad=int(Vp), n_vocab_tiles=int(n_tiles),
        feat_dim=int(K), vmem_cap=int(vmem_cap),
        # recurrent-path weights re-streamed every decode step -> bf16 halves their DMA
        wa_h_bf16=params["wa_h"].astype(jnp.bfloat16),
        wih_e_bf16=params["wih_e"].astype(jnp.bfloat16),
        wih_w_bf16=params["wih_w"].astype(jnp.bfloat16),
        whh_bf16=params["whh"].astype(jnp.bfloat16),
    )
    return prepped


def precompute_encoder(encoder_outputs, prepped, *, max_tile_s=256):
    """Once per source sequence: layout permute + encoder-side attention projection (+bias),
    batch padded to a multiple of 16 and src_len padded to a multiple of the seq tile."""
    enc = jnp.transpose(encoder_outputs, (1, 0, 2)).astype(jnp.float32)      # (B, S, E)
    B, S, E = enc.shape
    e_proj = (jnp.einsum("bse,ea->bsa", enc, prepped["wa_e"])
              + prepped["ba"].reshape(1, 1, -1))                             # (B, S, A)

    if S <= max_tile_s:
        tile_s = S
    else:
        tile_s = max(8, (max_tile_s // 8) * 8)        # sublane-aligned seq tile
    Sp = _round_up(S, tile_s)
    Bp = _round_up(B, 16)                             # full sublanes (incl. bf16 feature)
    enc = jnp.pad(enc, ((0, Bp - B), (0, Sp - S), (0, 0)))
    e_proj = jnp.pad(e_proj, ((0, Bp - B), (0, Sp - S), (0, 0)))
    return dict(enc=enc, e_proj=e_proj, tile_s=int(tile_s),
                s_actual=int(S), s_pad=int(Sp), batch=int(B), batch_pad=int(Bp))


# ---------------------------------------------------------------------------
# Per-step forward wrapper
# ---------------------------------------------------------------------------
def decoder_forward(dec_input, decoder_hidden, enc_pre, prepped):
    """dec_input: (B,) int32; decoder_hidden: (B, H); enc_pre: from precompute_encoder."""
    # glue (XLA): embedding gather; nn.Dropout is identity in eval mode
    embedded = jnp.take(prepped["embedding"], dec_input, axis=0)             # (B, EMB)

    B, H = decoder_hidden.shape
    Bp = enc_pre["batch_pad"]
    tile_s = enc_pre["tile_s"]
    Sp = enc_pre["s_pad"]
    E = enc_pre["enc"].shape[2]
    A = prepped["wa_h"].shape[1]
    EMB = embedded.shape[1]
    K = prepped["feat_dim"]
    vmem_cap = prepped["vmem_cap"]

    if Bp != B:
        embedded = jnp.pad(embedded, ((0, Bp - B), (0, 0)))
        hidden_p = jnp.pad(decoder_hidden, ((0, Bp - B), (0, 0)))
    else:
        hidden_p = decoder_hidden

    # ---------------- kernel A: attention (online softmax over seq tiles) + GRU ----------------
    need_mask = enc_pre["s_pad"] != enc_pre["s_actual"]
    kern_a = functools.partial(_attn_gru_kernel, s_actual=enc_pre["s_actual"],
                               tile_s=tile_s, need_mask=need_mask)
    lim_a = _clamp_vmem_limit(
        2 * Bp * tile_s * (E + A) * 4                  # enc + e_proj tiles (double-buffered)
        + 2 * Bp * (EMB + H) * 4                       # emb + hidden
        + 2 * (H * A + (EMB + E + H) * 3 * H) * 2      # bf16 weights
        + 2 * 2 * 3 * H * 4                            # f32 biases
        + 2 * (Bp * H * 4 + Bp * K * 2)                # outputs
        + Bp * (A + 2 + E) * 4,                        # scratch
        vmem_cap)

    h_new_p, feat = pl.pallas_call(
        kern_a,
        out_shape=(jax.ShapeDtypeStruct((Bp, H), jnp.float32),
                   jax.ShapeDtypeStruct((Bp, K), jnp.bfloat16)),
        grid=(Sp // tile_s,),
        in_specs=[
            pl.BlockSpec((Bp, tile_s, A), lambda s: (0, s, 0)),   # e_proj (streamed)
            pl.BlockSpec((Bp, tile_s, E), lambda s: (0, s, 0)),   # enc    (streamed)
            pl.BlockSpec((Bp, EMB), lambda s: (0, 0)),            # embedded (resident)
            pl.BlockSpec((Bp, H), lambda s: (0, 0)),              # hidden   (resident)
            pl.BlockSpec((H, A), lambda s: (0, 0)),               # wa_h  bf16
            pl.BlockSpec((EMB, 3 * H), lambda s: (0, 0)),         # wih_e bf16
            pl.BlockSpec((E, 3 * H), lambda s: (0, 0)),           # wih_w bf16
            pl.BlockSpec((1, 3 * H), lambda s: (0, 0)),           # bih   f32
            pl.BlockSpec((H, 3 * H), lambda s: (0, 0)),           # whh   bf16
            pl.BlockSpec((1, 3 * H), lambda s: (0, 0)),           # bhh   f32
        ],
        out_specs=(pl.BlockSpec((Bp, H), lambda s: (0, 0)),
                   pl.BlockSpec((Bp, K), lambda s: (0, 0))),
        scratch_shapes=[pltpu.VMEM((Bp, A), jnp.float32),    # hidden-side attn projection
                        pltpu.VMEM((Bp, 1), jnp.float32),    # running max
                        pltpu.VMEM((Bp, 1), jnp.float32),    # running denom
                        pltpu.VMEM((Bp, E), jnp.float32)],   # weighted-encoder accumulator
        compiler_params=pltpu.CompilerParams(
            dimension_semantics=("arbitrary",), vmem_limit_bytes=lim_a),
    )(enc_pre["e_proj"], enc_pre["enc"], embedded, hidden_p,
      prepped["wa_h_bf16"], prepped["wih_e_bf16"], prepped["wih_w_bf16"],
      prepped["bih"], prepped["whh_bf16"], prepped["bhh"])

    # ---------------- kernel B: vocab-tiled projection (weight-DMA bound) ----------------
    tile_v = prepped["tile_v"]
    Vp = prepped["vocab_pad"]
    n_tiles = prepped["n_vocab_tiles"]
    lim_b = _clamp_vmem_limit(
        2 * K * tile_v * 2          # double-buffered contiguous bf16 weight tile
        + 2 * Bp * tile_v * 4       # double-buffered f32 logits tile
        + 2 * Bp * K * 2            # resident bf16 feature
        + 2 * tile_v * 4,           # bias tile
        vmem_cap)

    logits_p = pl.pallas_call(
        _out_proj_kernel,
        out_shape=jax.ShapeDtypeStruct((Bp, Vp), jnp.float32),
        grid=(n_tiles,),
        in_specs=[
            pl.BlockSpec((Bp, K), lambda j: (0, 0)),                         # feat (resident)
            pl.BlockSpec((pl.Squeezed(), K, tile_v), lambda j: (j, 0, 0)),   # tile-major W_out
            pl.BlockSpec((1, tile_v), lambda j: (0, j)),                     # bias tile
        ],
        out_specs=pl.BlockSpec((Bp, tile_v), lambda j: (0, j)),              # lane-dense store
        compiler_params=pltpu.CompilerParams(
            dimension_semantics=("parallel",),     # v7x: two TensorCores split the vocab axis
            vmem_limit_bytes=lim_b),
    )(feat, prepped["w_out_tiles"], prepped["b_out"])

    return logits_p[:B, :prepped["vocab"]], h_new_p[:B]


# ---------------------------------------------------------------------------
# Pure-JAX reference (mirrors the PyTorch module in f32, eval mode)
# ---------------------------------------------------------------------------
def _reference_forward(dec_input, decoder_hidden, encoder_outputs, params):
    emb = jnp.take(params["embedding"], dec_input, axis=0)
    enc = jnp.transpose(encoder_outputs, (1, 0, 2))
    H = decoder_hidden.shape[1]
    energy = jnp.tanh(jnp.einsum("bse,ea->bsa", enc, params["wa_e"])
                      + (decoder_hidden @ params["wa_h"])[:, None, :]
                      + params["ba"].reshape(1, 1, -1))
    scores = jnp.sum(energy, axis=2)
    attn = jax.nn.softmax(scores, axis=1)
    weighted = jnp.einsum("bs,bse->be", attn, enc)
    gx = emb @ params["wih_e"] + weighted @ params["wih_w"] + params["bih"]
    gh = decoder_hidden @ params["whh"] + params["bhh"]
    r = jax.nn.sigmoid(gx[:, :H] + gh[:, :H])
    z = jax.nn.sigmoid(gx[:, H:2 * H] + gh[:, H:2 * H])
    n = jnp.tanh(gx[:, 2 * H:] + r * gh[:, 2 * H:])
    h_new = (1.0 - z) * n + z * decoder_hidden
    logits = (h_new @ params["wo_h"] + weighted @ params["wo_w"]
              + emb @ params["wo_e"] + params["bo"])
    return logits, h_new


def make_params(key, vocab, emb_dim, enc_hid, dec_hid, attn_dim):
    E = 2 * enc_hid
    H = dec_hid
    keys = jax.random.split(key, 12)
    s = 0.1
    return {
        "embedding": jax.random.normal(keys[0], (vocab, emb_dim), jnp.float32) * s,
        # attention Linear over cat(hidden, enc_out): split rows -> (H, A) and (E, A)
        "wa_h": jax.random.normal(keys[1], (H, attn_dim), jnp.float32) * s,
        "wa_e": jax.random.normal(keys[2], (E, attn_dim), jnp.float32) * s,
        "ba": jax.random.normal(keys[3], (1, attn_dim), jnp.float32) * s,
        # GRU weights (input is cat(embedded, weighted)): split rows -> (EMB,3H) and (E,3H)
        "wih_e": jax.random.normal(keys[4], (emb_dim, 3 * H), jnp.float32) * s,
        "wih_w": jax.random.normal(keys[5], (E, 3 * H), jnp.float32) * s,
        "bih": jax.random.normal(keys[6], (1, 3 * H), jnp.float32) * s,
        "whh": jax.random.normal(keys[7], (H, 3 * H), jnp.float32) * s,
        "bhh": jax.random.normal(keys[8], (1, 3 * H), jnp.float32) * s,
        # output Linear over cat(output, weighted, embedded): split rows
        "wo_h": jax.random.normal(keys[9], (H, vocab), jnp.float32) * s,
        "wo_w": jax.random.normal(keys[10], (E, vocab), jnp.float32) * s,
        "wo_e": jax.random.normal(keys[11], (emb_dim, vocab), jnp.float32) * s,
        "bo": jnp.zeros((1, vocab), jnp.float32),
    }


if __name__ == "__main__":
    vocab, emb_dim, enc_hid, dec_hid, attn_dim = 32, 16, 8, 16, 8
    src_len, batch = 12, 4

    root = jax.random.PRNGKey(0)
    kp, k1, k2, k3 = jax.random.split(root, 4)
    params = make_params(kp, vocab, emb_dim, enc_hid, dec_hid, attn_dim)
    prepped = prepare_decoder_params(params)

    dec_input = jax.random.randint(k1, (batch,), 0, vocab, dtype=jnp.int32)
    decoder_hidden = jax.random.normal(k2, (batch, dec_hid), jnp.float32)
    encoder_outputs = jax.random.normal(k3, (src_len, batch, 2 * enc_hid), jnp.float32)

    # small max_tile_s exercises the multi-tile online-softmax + seq-padding mask path
    enc_pre = precompute_encoder(encoder_outputs, prepped, max_tile_s=8)

    logits, h_new = decoder_forward(dec_input, decoder_hidden, enc_pre, prepped)
    jax.block_until_ready((logits, h_new))

    ref_logits, ref_h = _reference_forward(dec_input, decoder_hidden, encoder_outputs, params)
    assert logits.shape == (batch, vocab) and h_new.shape == (batch, dec_hid)
    # recurrent-path weights are bf16 (f32 accumulation / gates) -> modest tolerance
    assert jnp.allclose(h_new, ref_h, rtol=2e-2, atol=2e-2), \
        ("h_new max abs err", float(jnp.max(jnp.abs(h_new - ref_h))))
    # logits additionally go through bf16 W_out and the bf16 feature vector
    assert jnp.allclose(logits, ref_logits, rtol=3e-2, atol=3e-2), \
        ("logits max abs err", float(jnp.max(jnp.abs(logits - ref_logits))))

    print("KERNEL_OK")
</pallas_src>

<mosaic_0001>
module attributes {stable_mosaic.version = 11 : i64} {
  func.func @_attn_gru_kernel(%arg0: i32, %arg1: memref<16x8x8xf32, #tpu.memory_space<vmem>>, %arg2: memref<16x8x16xf32, #tpu.memory_space<vmem>>, %arg3: memref<16x16xf32, #tpu.memory_space<vmem>>, %arg4: memref<16x16xf32, #tpu.memory_space<vmem>>, %arg5: memref<16x8xbf16, #tpu.memory_space<vmem>>, %arg6: memref<16x48xbf16, #tpu.memory_space<vmem>>, %arg7: memref<16x48xbf16, #tpu.memory_space<vmem>>, %arg8: memref<1x48xf32, #tpu.memory_space<vmem>>, %arg9: memref<16x48xbf16, #tpu.memory_space<vmem>>, %arg10: memref<1x48xf32, #tpu.memory_space<vmem>>, %arg11: memref<16x16xf32, #tpu.memory_space<vmem>>, %arg12: memref<16x48xbf16, #tpu.memory_space<vmem>>, %arg13: memref<16x8xf32, #tpu.memory_space<vmem>>, %arg14: memref<16x1xf32, #tpu.memory_space<vmem>>, %arg15: memref<16x1xf32, #tpu.memory_space<vmem>>, %arg16: memref<16x16xf32, #tpu.memory_space<vmem>>) attributes {dimension_semantics = [#tpu.dimension_semantics<arbitrary>], iteration_bounds = array<i64: 2>, scalar_prefetch = 0 : i64, scratch_operands = 4 : i64, tpu.core_type = #tpu.core_type<tc>, window_params = [{transform_indices = @transform_0, window_bounds = array<i64: 16, 8, 8>}, {transform_indices = @transform_1, window_bounds = array<i64: 16, 8, 16>}, {pipeline_mode = #tpu.pipeline_mode<synchronous>, transform_indices = @transform_2, window_bounds = array<i64: 16, 16>}, {pipeline_mode = #tpu.pipeline_mode<synchronous>, transform_indices = @transform_3, window_bounds = array<i64: 16, 16>}, {pipeline_mode = #tpu.pipeline_mode<synchronous>, transform_indices = @transform_4, window_bounds = array<i64: 16, 8>}, {pipeline_mode = #tpu.pipeline_mode<synchronous>, transform_indices = @transform_5, window_bounds = array<i64: 16, 48>}, {pipeline_mode = #tpu.pipeline_mode<synchronous>, transform_indices = @transform_6, window_bounds = array<i64: 16, 48>}, {pipeline_mode = #tpu.pipeline_mode<synchronous>, transform_indices = @transform_7, window_bounds = array<i64: 1, 48>}, {pipeline_mode = #tpu.pipeline_mode<synchronous>, transform_indices = @transform_8, window_bounds = array<i64: 16, 48>}, {pipeline_mode = #tpu.pipeline_mode<synchronous>, transform_indices = @transform_9, window_bounds = array<i64: 1, 48>}, {pipeline_mode = #tpu.pipeline_mode<synchronous>, transform_indices = @transform_10, window_bounds = array<i64: 16, 16>}, {pipeline_mode = #tpu.pipeline_mode<synchronous>, transform_indices = @transform_11, window_bounds = array<i64: 16, 48>}]} {
    %c0 = arith.constant 0 : index
    %c0_0 = arith.constant 0 : index
    %0 = vector.load %arg4[%c0, %c0_0] : memref<16x16xf32, #tpu.memory_space<vmem>>, vector<16x16xf32>
    %c0_i32 = arith.constant 0 : i32
    %1 = arith.cmpi eq, %arg0, %c0_i32 : i32
    %2 = arith.extui %1 : i1 to i32
    %c0_i32_1 = arith.constant 0 : i32
    %3 = arith.cmpi ne, %2, %c0_i32_1 : i32
    scf.if %3 {
      %48 = arith.truncf %0 : vector<16x16xf32> to vector<16x16xbf16>
      %c0_27 = arith.constant 0 : index
      %c0_28 = arith.constant 0 : index
      %49 = vector.load %arg5[%c0_27, %c0_28] : memref<16x8xbf16, #tpu.memory_space<vmem>>, vector<16x8xbf16>
      %cst_29 = arith.constant dense<0.000000e+00> : vector<16x8xf32>
      %50 = tpu.matmul %48, %49, %cst_29 {dimension_numbers = #tpu.dot_dimension_numbers<[1], [0], [0], [1], [0, 0, 1, 1], [], []>} : vector<16x16xbf16>, vector<16x8xbf16>, vector<16x8xf32> -> vector<16x8xf32>
      %c0_30 = arith.constant 0 : index
      %c0_31 = arith.constant 0 : index
      %51 = vector.load %arg13[%c0_30, %c0_31] : memref<16x8xf32, #tpu.memory_space<vmem>>, vector<16x8xf32>
      tpu.vector_store %arg13[%c0_30, %c0_31], %50 {strides = array<i32>} : memref<16x8xf32, #tpu.memory_space<vmem>>, vector<16x8xf32>,
      %cst_32 = arith.constant -1.000000e+30 : f32
      %52 = vector.broadcast %cst_32 : f32 to vector<16x1xf32>
      %c0_33 = arith.constant 0 : index
      %c0_34 = arith.constant 0 : index
      %53 = vector.load %arg14[%c0_33, %c0_34] : memref<16x1xf32, #tpu.memory_space<vmem>>, vector<16x1xf32>
      tpu.vector_store %arg14[%c0_33, %c0_34], %52 {strides = array<i32>} : memref<16x1xf32, #tpu.memory_space<vmem>>, vector<16x1xf32>,
      %cst_35 = arith.constant 0.000000e+00 : f32
      %54 = vector.broadcast %cst_35 : f32 to vector<16x1xf32>
      %c0_36 = arith.constant 0 : index
      %c0_37 = arith.constant 0 : index
      %55 = vector.load %arg15[%c0_36, %c0_37] : memref<16x1xf32, #tpu.memory_space<vmem>>, vector<16x1xf32>
      tpu.vector_store %arg15[%c0_36, %c0_37], %54 {strides = array<i32>} : memref<16x1xf32, #tpu.memory_space<vmem>>, vector<16x1xf32>,
      %cst_38 = arith.constant 0.000000e+00 : f32
      %56 = vector.broadcast %cst_38 : f32 to vector<16x16xf32>
      %c0_39 = arith.constant 0 : index
      %c0_40 = arith.constant 0 : index
      %57 = vector.load %arg16[%c0_39, %c0_40] : memref<16x16xf32, #tpu.memory_space<vmem>>, vector<16x16xf32>
      tpu.vector_store %arg16[%c0_39, %c0_40], %56 {strides = array<i32>} : memref<16x16xf32, #tpu.memory_space<vmem>>, vector<16x16xf32>,
    } else {
    }
    %c0_2 = arith.constant 0 : index
    %c0_3 = arith.constant 0 : index
    %c0_4 = arith.constant 0 : index
    %4 = vector.load %arg2[%c0_2, %c0_3, %c0_4] : memref<16x8x16xf32, #tpu.memory_space<vmem>>, vector<16x8x16xf32>
    %c0_5 = arith.constant 0 : index
    %c0_6 = arith.constant 0 : index
    %c0_7 = arith.constant 0 : index
    %5 = vector.load %arg1[%c0_5, %c0_6, %c0_7] : memref<16x8x8xf32, #tpu.memory_space<vmem>>, vector<16x8x8xf32>
    %c0_8 = arith.constant 0 : index
    %c0_9 = arith.constant 0 : index
    %6 = vector.load %arg13[%c0_8, %c0_9] : memref<16x8xf32, #tpu.memory_space<vmem>>, vector<16x8xf32>
    %7 = vector.shape_cast %6 : vector<16x8xf32> to vector<16x1x8xf32>
    %8 = vector.broadcast %7 : vector<16x1x8xf32> to vector<16x8x8xf32>
    %9 = arith.addf %5, %8 : vector<16x8x8xf32>
    %10 = math.tanh %9 : vector<16x8x8xf32>
    %cst = arith.constant dense<0.000000e+00> : vector<16x8xf32>
    %11 = vector.multi_reduction <add>, %10, %cst [2] : vector<16x8x8xf32> to vector<16x8xf32>
    %c8_i32 = arith.constant 8 : i32
    %12 = arith.muli %arg0, %c8_i32 : i32
    %13 = tpu.iota {dimensions = array<i32: 1>} : vector<16x8xi32>
    %14 = vector.broadcast %12 : i32 to vector<16x8xi32>
    %15 = arith.addi %14, %13 : vector<16x8xi32>
    %c12_i32 = arith.constant 12 : i32
    %16 = vector.broadcast %c12_i32 : i32 to vector<16x8xi32>
    %17 = arith.cmpi slt, %15, %16 : vector<16x8xi32>
    %cst_10 = arith.constant -1.000000e+30 : f32
    %18 = vector.broadcast %cst_10 : f32 to vector<16x8xf32>
    %19 = arith.select %17, %11, %18 : vector<16x8xi1>, vector<16x8xf32>
    %c0_11 = arith.constant 0 : index
    %c0_12 = arith.constant 0 : index
    %20 = vector.load %arg14[%c0_11, %c0_12] : memref<16x1xf32, #tpu.memory_space<vmem>>, vector<16x1xf32>
    %cst_13 = arith.constant dense<0xFF800000> : vector<16xf32>
    %21 = vector.multi_reduction <maximumf>, %19, %cst_13 [1] : vector<16x8xf32> to vector<16xf32>
    %22 = vector.shape_cast %21 : vector<16xf32> to vector<16x1xf32>
    %23 = arith.maximumf %20, %22 : vector<16x1xf32>
    %24 = arith.subf %20, %23 : vector<16x1xf32>
    %25 = math.exp %24 : vector<16x1xf32>
    %26 = vector.broadcast %23 : vector<16x1xf32> to vector<16x8xf32>
    %27 = arith.subf %19, %26 : vector<16x8xf32>
    %28 = math.exp %27 : vector<16x8xf32>
    %c0_14 = arith.constant 0 : index
    %c0_15 = arith.constant 0 : index
    %29 = vector.load %arg15[%c0_14, %c0_15] : memref<16x1xf32, #tpu.memory_space<vmem>>, vector<16x1xf32>
    %30 = arith.mulf %25, %29 : vector<16x1xf32>
    %cst_16 = arith.constant dense<0.000000e+00> : vector<16xf32>
    %31 = vector.multi_reduction <add>, %28, %cst_16 [1] : vector<16x8xf32> to vector<16xf32>
    %32 = vector.shape_cast %31 : vector<16xf32> to vector<16x1xf32>
    %33 = arith.addf %30, %32 : vector<16x1xf32>
    %c0_17 = arith.constant 0 : index
    %c0_18 = arith.constant 0 : index
    %34 = vector.load %arg15[%c0_17, %c0_18] : memref<16x1xf32, #tpu.memory_space<vmem>>, vector<16x1xf32>
    tpu.vector_store %arg15[%c0_17, %c0_18], %33 {strides = array<i32>} : memref<16x1xf32, #tpu.memory_space<vmem>>, vector<16x1xf32>,
    %c0_19 = arith.constant 0 : index
    %c0_20 = arith.constant 0 : index
    %35 = vector.load %arg16[%c0_19, %c0_20] : memref<16x16xf32, #tpu.memory_space<vmem>>, vector<16x16xf32>
    %36 = vector.broadcast %25 : vector<16x1xf32> to vector<16x16xf32>
    %37 = arith.mulf %36, %35 : vector<16x16xf32>
    %38 = vector.shape_cast %28 : vector<16x8xf32> to vector<16x8x1xf32>
    %39 = vector.broadcast %38 : vector<16x8x1xf32> to vector<16x8x16xf32>
    %40 = arith.mulf %39, %4 : vector<16x8x16xf32>
    %cst_21 = arith.constant dense<0.000000e+00> : vector<16x16xf32>
    %41 = vector.multi_reduction <add>, %40, %cst_21 [1] : vector<16x8x16xf32> to vector<16x16xf32>
    %42 = arith.addf %37, %41 : vector<16x16xf32>
    %c0_22 = arith.constant 0 : index
    %c0_23 = arith.constant 0 : index
    %43 = vector.load %arg16[%c0_22, %c0_23] : memref<16x16xf32, #tpu.memory_space<vmem>>, vector<16x16xf32>
    tpu.vector_store %arg16[%c0_22, %c0_23], %42 {strides = array<i32>} : memref<16x16xf32, #tpu.memory_space<vmem>>, vector<16x16xf32>,
    %c0_24 = arith.constant 0 : index
    %c0_25 = arith.constant 0 : index
    %44 = vector.load %arg14[%c0_24, %c0_25] : memref<16x1xf32, #tpu.memory_space<vmem>>, vector<16x1xf32>
    tpu.vector_store %arg14[%c0_24, %c0_25], %23 {strides = array<i32>} : memref<16x1xf32, #tpu.memory_space<vmem>>, vector<16x1xf32>,
    %c1_i32 = arith.constant 1 : i32
    %45 = arith.cmpi eq, %arg0, %c1_i32 : i32
    %46 = arith.extui %45 : i1 to i32
    %c0_i32_26 = arith.constant 0 : i32
    %47 = arith.cmpi ne, %46, %c0_i32_26 : i32
    scf.if %47 {
      %c0_27 = arith.constant 0 : index
      %c0_28 = arith.constant 0 : index
      %48 = vector.load %arg3[%c0_27, %c0_28] : memref<16x16xf32, #tpu.memory_space<vmem>>, vector<16x16xf32>
      %c0_29 = arith.constant 0 : index
      %c0_30 = arith.constant 0 : index
      %49 = vector.load %arg16[%c0_29, %c0_30] : memref<16x16xf32, #tpu.memory_space<vmem>>, vector<16x16xf32>
      %c0_31 = arith.constant 0 : index
      %c0_32 = arith.constant 0 : index
      %50 = vector.load %arg15[%c0_31, %c0_32] : memref<16x1xf32, #tpu.memory_space<vmem>>, vector<16x1xf32>
      %51 = vector.broadcast %50 : vector<16x1xf32> to vector<16x16xf32>
      %52 = arith.divf %49, %51 : vector<16x16xf32>
      %53 = arith.truncf %48 : vector<16x16xf32> to vector<16x16xbf16>
      %c0_33 = arith.constant 0 : index
      %c0_34 = arith.constant 0 : index
      %54 = vector.load %arg6[%c0_33, %c0_34] : memref<16x48xbf16, #tpu.memory_space<vmem>>, vector<16x48xbf16>
      %cst_35 = arith.constant dense<0.000000e+00> : vector<16x48xf32>
      %55 = tpu.matmul %53, %54, %cst_35 {dimension_numbers = #tpu.dot_dimension_numbers<[1], [0], [0], [1], [0, 0, 1, 1], [], []>} : vector<16x16xbf16>, vector<16x48xbf16>, vector<16x48xf32> -> vector<16x48xf32>
      %56 = arith.truncf %52 : vector<16x16xf32> to vector<16x16xbf16>
      %c0_36 = arith.constant 0 : index
      %c0_37 = arith.constant 0 : index
      %57 = vector.load %arg7[%c0_36, %c0_37] : memref<16x48xbf16, #tpu.memory_space<vmem>>, vector<16x48xbf16>
      %cst_38 = arith.constant dense<0.000000e+00> : vector<16x48xf32>
      %58 = tpu.matmul %56, %57, %cst_38 {dimension_numbers = #tpu.dot_dimension_numbers<[1], [0], [0], [1], [0, 0, 1, 1], [], []>} : vector<16x16xbf16>, vector<16x48xbf16>, vector<16x48xf32> -> vector<16x48xf32>
      %59 = arith.addf %55, %58 : vector<16x48xf32>
      %c0_39 = arith.constant 0 : index
      %c0_40 = arith.constant 0 : index
      %60 = vector.load %arg8[%c0_39, %c0_40] : memref<1x48xf32, #tpu.memory_space<vmem>>, vector<1x48xf32>
      %61 = vector.broadcast %60 : vector<1x48xf32> to vector<16x48xf32>
      %62 = arith.addf %59, %61 : vector<16x48xf32>
      %63 = arith.truncf %0 : vector<16x16xf32> to vector<16x16xbf16>
      %c0_41 = arith.constant 0 : index
      %c0_42 = arith.constant 0 : index
      %64 = vector.load %arg9[%c0_41, %c0_42] : memref<16x48xbf16, #tpu.memory_space<vmem>>, vector<16x48xbf16>
      %cst_43 = arith.constant dense<0.000000e+00> : vector<16x48xf32>
      %65 = tpu.matmul %63, %64, %cst_43 {dimension_numbers = #tpu.dot_dimension_numbers<[1], [0], [0], [1], [0, 0, 1, 1], [], []>} : vector<16x16xbf16>, vector<16x48xbf16>, vector<16x48xf32> -> vector<16x48xf32>
      %c0_44 = arith.constant 0 : index
      %c0_45 = arith.constant 0 : index
      %66 = vector.load %arg10[%c0_44, %c0_45] : memref<1x48xf32, #tpu.memory_space<vmem>>, vector<1x48xf32>
      %67 = vector.broadcast %66 : vector<1x48xf32> to vector<16x48xf32>
      %68 = arith.addf %65, %67 : vector<16x48xf32>
      %69 = vector.extract_strided_slice %62 {offsets = [0, 0], sizes = [16, 16], strides = [1, 1]} : vector<16x48xf32> to vector<16x16xf32>
      %70 = vector.extract_strided_slice %68 {offsets = [0, 0], sizes = [16, 16], strides = [1, 1]} : vector<16x48xf32> to vector<16x16xf32>
      %71 = arith.addf %69, %70 : vector<16x16xf32>
      %72 = arith.negf %71 : vector<16x16xf32>
      %73 = math.exp %72 : vector<16x16xf32>
      %cst_46 = arith.constant 1.000000e+00 : f32
      %74 = vector.broadcast %cst_46 : f32 to vector<16x16xf32>
      %75 = arith.addf %74, %73 : vector<16x16xf32>
      %76 = arith.divf %74, %75 : vector<16x16xf32>
      %77 = vector.extract_strided_slice %62 {offsets = [0, 16], sizes = [16, 16], strides = [1, 1]} : vector<16x48xf32> to vector<16x16xf32>
      %78 = vector.extract_strided_slice %68 {offsets = [0, 16], sizes = [16, 16], strides = [1, 1]} : vector<16x48xf32> to vector<16x16xf32>
      %79 = arith.addf %77, %78 : vector<16x16xf32>
      %80 = arith.negf %79 : vector<16x16xf32>
      %81 = math.exp %80 : vector<16x16xf32>
      %cst_47 = arith.constant 1.000000e+00 : f32
      %82 = vector.broadcast %cst_47 : f32 to vector<16x16xf32>
      %83 = arith.addf %82, %81 : vector<16x16xf32>
      %84 = arith.divf %82, %83 : vector<16x16xf32>
      %85 = vector.extract_strided_slice %62 {offsets = [0, 32], sizes = [16, 16], strides = [1, 1]} : vector<16x48xf32> to vector<16x16xf32>
      %86 = vector.extract_strided_slice %68 {offsets = [0, 32], sizes = [16, 16], strides = [1, 1]} : vector<16x48xf32> to vector<16x16xf32>
      %87 = arith.mulf %76, %86 : vector<16x16xf32>
      %88 = arith.addf %85, %87 : vector<16x16xf32>
      %89 = math.tanh %88 : vector<16x16xf32>
      %cst_48 = arith.constant 1.000000e+00 : f32
      %90 = vector.broadcast %cst_48 : f32 to vector<16x16xf32>
      %91 = arith.subf %90, %84 : vector<16x16xf32>
      %92 = arith.mulf %91, %89 : vector<16x16xf32>
      %93 = arith.mulf %84, %0 : vector<16x16xf32>
      %94 = arith.addf %92, %93 : vector<16x16xf32>
      %c0_49 = arith.constant 0 : index
      %c0_50 = arith.constant 0 : index
      %95 = vector.load %arg11[%c0_49, %c0_50] : memref<16x16xf32, #tpu.memory_space<vmem>>, vector<16x16xf32>
      tpu.vector_store %arg11[%c0_49, %c0_50], %94 {strides = array<i32>} : memref<16x16xf32, #tpu.memory_space<vmem>>, vector<16x16xf32>,
      %96 = tpu.concatenate %94, %52, %48 in 1 : vector<16x16xf32>, vector<16x16xf32>, vector<16x16xf32> -> vector<16x48xf32>
      %97 = arith.truncf %96 : vector<16x48xf32> to vector<16x48xbf16>
      %c0_51 = arith.constant 0 : index
      %c0_52 = arith.constant 0 : index
      %98 = vector.load %arg12[%c0_51, %c0_52] : memref<16x48xbf16, #tpu.memory_space<vmem>>, vector<16x48xbf16>
      tpu.vector_store %arg12[%c0_51, %c0_52], %97 {strides = array<i32>} : memref<16x48xbf16, #tpu.memory_space<vmem>>, vector<16x48xbf16>,
    } else {
    }
    return
  }
  func.func @transform_0(%arg0: i32) -> (i32, i32, i32) {
    %c0_i32 = arith.constant 0 : i32
    %c0_i32_0 = arith.constant 0 : i32
    %c0_i32_1 = arith.constant 0 : i32
    return %c0_i32, %arg0, %c0_i32_0 : i32, i32, i32
  }
  func.func @transform_1(%arg0: i32) -> (i32, i32, i32) {
    %c0_i32 = arith.constant 0 : i32
    %c0_i32_0 = arith.constant 0 : i32
    %c0_i32_1 = arith.constant 0 : i32
    return %c0_i32, %arg0, %c0_i32_0 : i32, i32, i32
  }
  func.func @transform_2(%arg0: i32) -> (i32, i32) {
    %c0_i32 = arith.constant 0 : i32
    %c0_i32_0 = arith.constant 0 : i32
    %c0_i32_1 = arith.constant 0 : i32
    return %c0_i32, %c0_i32_0 : i32, i32
  }
  func.func @transform_3(%arg0: i32) -> (i32, i32) {
    %c0_i32 = arith.constant 0 : i32
    %c0_i32_0 = arith.constant 0 : i32
    %c0_i32_1 = arith.constant 0 : i32
    return %c0_i32, %c0_i32_0 : i32, i32
  }
  func.func @transform_4(%arg0: i32) -> (i32, i32) {
    %c0_i32 = arith.constant 0 : i32
    %c0_i32_0 = arith.constant 0 : i32
    %c0_i32_1 = arith.constant 0 : i32
    return %c0_i32, %c0_i32_0 : i32, i32
  }
  func.func @transform_5(%arg0: i32) -> (i32, i32) {
    %c0_i32 = arith.constant 0 : i32
    %c0_i32_0 = arith.constant 0 : i32
    %c0_i32_1 = arith.constant 0 : i32
    return %c0_i32, %c0_i32_0 : i32, i32
  }
  func.func @transform_6(%arg0: i32) -> (i32, i32) {
    %c0_i32 = arith.constant 0 : i32
    %c0_i32_0 = arith.constant 0 : i32
    %c0_i32_1 = arith.constant 0 : i32
    return %c0_i32, %c0_i32_0 : i32, i32
  }
  func.func @transform_7(%arg0: i32) -> (i32, i32) {
    %c0_i32 = arith.constant 0 : i32
    %c0_i32_0 = arith.constant 0 : i32
    %c0_i32_1 = arith.constant 0 : i32
    return %c0_i32, %c0_i32_0 : i32, i32
  }
  func.func @transform_8(%arg0: i32) -> (i32, i32) {
    %c0_i32 = arith.constant 0 : i32
    %c0_i32_0 = arith.constant 0 : i32
    %c0_i32_1 = arith.constant 0 : i32
    return %c0_i32, %c0_i32_0 : i32, i32
  }
  func.func @transform_9(%arg0: i32) -> (i32, i32) {
    %c0_i32 = arith.constant 0 : i32
    %c0_i32_0 = arith.constant 0 : i32
    %c0_i32_1 = arith.constant 0 : i32
    return %c0_i32, %c0_i32_0 : i32, i32
  }
  func.func @transform_10(%arg0: i32) -> (i32, i32) {
    %c0_i32 = arith.constant 0 : i32
    %c0_i32_0 = arith.constant 0 : i32
    %c0_i32_1 = arith.constant 0 : i32
    return %c0_i32, %c0_i32_0 : i32, i32
  }
  func.func @transform_11(%arg0: i32) -> (i32, i32) {
    %c0_i32 = arith.constant 0 : i32
    %c0_i32_0 = arith.constant 0 : i32
    %c0_i32_1 = arith.constant 0 : i32
    return %c0_i32, %c0_i32_0 : i32, i32
  }
}

</mosaic_0001>

<llo_original>
// kernel: tpu_custom_call.1
$region0: #{tpu_custom_call.1}
  #allocation0 [shape = 'u32[]', space=smem, size = 0x4, offset = 0x4, fixed_abs, tag = 'smem constant byte address 0x4 - core index']
  #allocation1 [shape = 'u32[144,128]{1,0:T(1,128)}', space=vmem, size = 0x12000, scoped, tag = 'internal scratch']
  #allocation2 [shape = 'f32[16,8]{1,0:T(8,128)}', space=vmem, size = 0x2000, scoped, tag = 'scratch operand']
  #allocation3 [shape = 'f32[16,1]{1,0:T(8,128)}', space=vmem, size = 0x2000, scoped, tag = 'scratch operand']
  #allocation4 [shape = 'f32[16,1]{1,0:T(8,128)}', space=vmem, size = 0x2000, scoped, tag = 'scratch operand']
  #allocation5 [shape = 'f32[16,16]{1,0:T(8,128)}', space=vmem, size = 0x2000, scoped, tag = 'scratch operand']
  %s0 = inlined_call_operand.vmem [shape: f32[16,16,8], index: 0, kind: input, shape index: {}]
  %s1 = inlined_call_operand.vmem [shape: f32[16,16,16], index: 1, kind: input, shape index: {}]
  %s2 = inlined_call_operand.vmem [shape: f32[16,16], index: 2, kind: input, shape index: {}]
  %s3 = inlined_call_operand.vmem [shape: f32[16,16], index: 3, kind: input, shape index: {}]
  %s4 = inlined_call_operand.vmem [shape: bf16[16,8], index: 4, kind: input, shape index: {}]
  %s5 = inlined_call_operand.vmem [shape: bf16[16,48], index: 5, kind: input, shape index: {}]
  %s6 = inlined_call_operand.vmem [shape: bf16[16,48], index: 6, kind: input, shape index: {}]
  %s7 = inlined_call_operand.vmem [shape: f32[1,48], index: 7, kind: input, shape index: {}]
  %s8 = inlined_call_operand.vmem [shape: bf16[16,48], index: 8, kind: input, shape index: {}]
  %s9 = inlined_call_operand.vmem [shape: f32[1,48], index: 9, kind: input, shape index: {}]
  %s10 = inlined_call_operand.hbm [shape: f32[16,16], index: 10, kind: output, shape index: {0}]
  %s11 = inlined_call_operand.hbm [shape: bf16[16,48], index: 11, kind: output, shape index: {1}]
  %12 = xla_tuple %s10, %s11
  %s13 = sld [smem:[#allocation0]]
  $region165: #{tpu_custom_call.1} parent=0
    _
  %s15 = ssub.s32 1, %s13
  %s16 = scalar_select 0, %s15, %s13
  $region1: #{tpu_custom_call.1} parent=0
    #allocation6 [shape = 'u8[131072]{0}', space=vmem, size = 0x20000, scoped, tag = 'input window, operand 0']
    #allocation7 [shape = 'u8[131072]{0}', space=vmem, size = 0x20000, scoped, tag = 'input window, operand 1']
    #allocation8 [shape = 'u8[8192]{0}', space=vmem, size = 0x2000, scoped, tag = 'output window, operand 0, single buffered']
    #allocation9 [shape = 's32[2]{0}', space=sflag, size = 0x8, scoped, tag = 'scoped memory for tpu_custom_call.1']
    #allocation10 [shape = 'u8[4096]{0}', space=vmem, size = 0x1000, scoped, tag = 'output window, operand 1, single buffered']
    #allocation11 [shape = 's32[1]{0}', space=sflag, size = 0x4, scoped, tag = 'scoped memory for tpu_custom_call.1']
    %17 = vsyncpa [#allocation9], 0
    %18 = vsyncpa [#allocation11], 0
    loop: start=0, step=1, limit=4
    $region2: #{tpu_custom_call.1} parent=1 // loop_pre_header
      _
    $region3: #{tpu_custom_call.1} parent=1 // loop_header
      %s20 = sphi 0, %s24
      %p21 = scmp.ge.s32.totalorder %s20, 4
      %s30 = sphi 0, %s32
      %s33 = sphi 0, %s30
      %s34 = sphi 0, %s33
      %s50 = sphi 0, %s34
      %s56 = sphi 0, %s58
      %s59 = sphi 0, %s56
      %s60 = sphi 0, %s59
      %s76 = sphi 0, %s60
      %s80 = sphi 0, %s80
      %s82 = sphi 0, %s80
      %s83 = sphi 0, %s82
      %s97 = sphi 0, %s83
      %s101 = sphi 0, %s101
      %s103 = sphi 0, %s101
      %s104 = sphi 0, %s103
      %s118 = sphi 0, %s104
      %s122 = sphi 0, %s122
      %s124 = sphi 0, %s122
      %s125 = sphi 0, %s124
      %s139 = sphi 0, %s125
      %s143 = sphi 0, %s143
      %s145 = sphi 0, %s143
      %s146 = sphi 0, %s145
      %s160 = sphi 0, %s146
      %s164 = sphi 0, %s164
      %s166 = sphi 0, %s164
      %s167 = sphi 0, %s166
      %s181 = sphi 0, %s167
      %s185 = sphi 0, %s185
      %s187 = sphi 0, %s185
      %s188 = sphi 0, %s187
      %s202 = sphi 0, %s188
      %s206 = sphi 0, %s206
      %s208 = sphi 0, %s206
      %s209 = sphi 0, %s208
      %s223 = sphi 0, %s209
      %s227 = sphi 0, %s227
      %s229 = sphi 0, %s227
      %s230 = sphi 0, %s229
      %s244 = sphi 0, %s230
      %s248 = sphi 0, %s248
      %s250 = sphi 0, %s248
      %s251 = sphi 0, %s250
      %s265 = sphi 0, %s251
      %s269 = sphi 0, %s269
      %s271 = sphi 0, %s269
      %s272 = sphi 0, %s271
      %s286 = sphi 0, %s272
    $region4: #{tpu_custom_call.1} parent=1 // loop_header_branch
      %23 = sbr.rel (%p21) target = $region8
    $region5: #{tpu_custom_call.1} parent=1 // loop_body
      %s25 = ssub.s32 %s20, 1
      %s26 = ssub.s32 %s20, 2
      %s27 = sadd.s32 %s20, 1
      %s28 = ssub.s32 %s20, %s27
      %p29 = scmp.eq.s32.totalorder %s28, 0
      %s31 = sadd.s32 %s30, 1
      %s32 = scalar_select %p29, %s30, %s31
      %p35 = pneg %p29
      %p36 = scmp.eq.s32.totalorder %s20, 1
      %p37 = por %p35, %p36
      %p38 = scmp.ne.s32.totalorder %s30, %s33
      %p39 = scmp.eq.s32.totalorder %s20, 0
      %p40 = por %p38, %p39
      %p41 = scmp.ne.s32.totalorder %s30, %s33
      %p42 = scmp.eq.s32.totalorder %s25, 1
      %p43 = por %p41, %p42
      %p44 = scmp.ne.s32.totalorder %s33, %s34
      %p45 = scmp.eq.s32.totalorder %s25, 0
      %p46 = por %p44, %p45
      %p47 = scmp.ne.s32.totalorder %s33, %s34
      %p48 = scmp.eq.s32.totalorder %s26, 1
      %p49 = por %p47, %p48
      %p51 = scmp.ne.s32.totalorder %s34, %s50
      %p52 = scmp.eq.s32.totalorder %s26, 0
      %p53 = por %p51, %p52
      %s54 = ssub.s32 %s20, %s27
      %p55 = scmp.eq.s32.totalorder %s54, 0
      %s57 = sadd.s32 %s56, 1
      %s58 = scalar_select %p55, %s56, %s57
      %p61 = pneg %p55
      %p62 = scmp.eq.s32.totalorder %s20, 1
      %p63 = por %p61, %p62
      %p64 = scmp.ne.s32.totalorder %s56, %s59
      %p65 = scmp.eq.s32.totalorder %s20, 0
      %p66 = por %p64, %p65
      %p67 = scmp.ne.s32.totalorder %s56, %s59
      %p68 = scmp.eq.s32.totalorder %s25, 1
      %p69 = por %p67, %p68
      %p70 = scmp.ne.s32.totalorder %s59, %s60
      %p71 = scmp.eq.s32.totalorder %s25, 0
      %p72 = por %p70, %p71
      %p73 = scmp.ne.s32.totalorder %s59, %s60
      %p74 = scmp.eq.s32.totalorder %s26, 1
      %p75 = por %p73, %p74
      %p77 = scmp.ne.s32.totalorder %s60, %s76
      %p78 = scmp.eq.s32.totalorder %s26, 0
      %p79 = por %p77, %p78
      %s81 = sadd.s32 %s80, 1
      %p84 = scmp.eq.s32.totalorder %s20, 1
      %p85 = scmp.ne.s32.totalorder %s80, %s82
      %p86 = scmp.eq.s32.totalorder %s20, 0
      %p87 = por %p85, %p86
      %p88 = scmp.ne.s32.totalorder %s80, %s82
      %p89 = scmp.eq.s32.totalorder %s25, 1
      %p90 = por %p88, %p89
      %p91 = scmp.ne.s32.totalorder %s82, %s83
      %p92 = scmp.eq.s32.totalorder %s25, 0
      %p93 = por %p91, %p92
      %p94 = scmp.ne.s32.totalorder %s82, %s83
      %p95 = scmp.eq.s32.totalorder %s26, 1
      %p96 = por %p94, %p95
      %p98 = scmp.ne.s32.totalorder %s83, %s97
      %p99 = scmp.eq.s32.totalorder %s26, 0
      %p100 = por %p98, %p99
      %s102 = sadd.s32 %s101, 1
      %p105 = scmp.eq.s32.totalorder %s20, 1
      %p106 = scmp.ne.s32.totalorder %s101, %s103
      %p107 = scmp.eq.s32.totalorder %s20, 0
      %p108 = por %p106, %p107
      %p109 = scmp.ne.s32.totalorder %s101, %s103
      %p110 = scmp.eq.s32.totalorder %s25, 1
      %p111 = por %p109, %p110
      %p112 = scmp.ne.s32.totalorder %s103, %s104
      %p113 = scmp.eq.s32.totalorder %s25, 0
      %p114 = por %p112, %p113
      %p115 = scmp.ne.s32.totalorder %s103, %s104
      %p116 = scmp.eq.s32.totalorder %s26, 1
      %p117 = por %p115, %p116
      %p119 = scmp.ne.s32.totalorder %s104, %s118
      %p120 = scmp.eq.s32.totalorder %s26, 0
      %p121 = por %p119, %p120
      %s123 = sadd.s32 %s122, 1
      %p126 = scmp.eq.s32.totalorder %s20, 1
      %p127 = scmp.ne.s32.totalorder %s122, %s124
      %p128 = scmp.eq.s32.totalorder %s20, 0
      %p129 = por %p127, %p128
      %p130 = scmp.ne.s32.totalorder %s122, %s124
      %p131 = scmp.eq.s32.totalorder %s25, 1
      %p132 = por %p130, %p131
      %p133 = scmp.ne.s32.totalorder %s124, %s125
      %p134 = scmp.eq.s32.totalorder %s25, 0
      %p135 = por %p133, %p134
      %p136 = scmp.ne.s32.totalorder %s124, %s125
      %p137 = scmp.eq.s32.totalorder %s26, 1
      %p138 = por %p136, %p137
      %p140 = scmp.ne.s32.totalorder %s125, %s139
      %p141 = scmp.eq.s32.totalorder %s26, 0
      %p142 = por %p140, %p141
      %s144 = sadd.s32 %s143, 1
      %p147 = scmp.eq.s32.totalorder %s20, 1
      %p148 = scmp.ne.s32.totalorder %s143, %s145
      %p149 = scmp.eq.s32.totalorder %s20, 0
      %p150 = por %p148, %p149
      %p151 = scmp.ne.s32.totalorder %s143, %s145
      %p152 = scmp.eq.s32.totalorder %s25, 1
      %p153 = por %p151, %p152
      %p154 = scmp.ne.s32.totalorder %s145, %s146
      %p155 = scmp.eq.s32.totalorder %s25, 0
      %p156 = por %p154, %p155
      %p157 = scmp.ne.s32.totalorder %s145, %s146
      %p158 = scmp.eq.s32.totalorder %s26, 1
      %p159 = por %p157, %p158
      %p161 = scmp.ne.s32.totalorder %s146, %s160
      %p162 = scmp.eq.s32.totalorder %s26, 0
      %p163 = por %p161, %p162
      %s165 = sadd.s32 %s164, 1
      %p168 = scmp.eq.s32.totalorder %s20, 1
      %p169 = scmp.ne.s32.totalorder %s164, %s166
      %p170 = scmp.eq.s32.totalorder %s20, 0
      %p171 = por %p169, %p170
      %p172 = scmp.ne.s32.totalorder %s164, %s166
      %p173 = scmp.eq.s32.totalorder %s25, 1
      %p174 = por %p172, %p173
      %p175 = scmp.ne.s32.totalorder %s166, %s167
      %p176 = scmp.eq.s32.totalorder %s25, 0
      %p177 = por %p175, %p176
      %p178 = scmp.ne.s32.totalorder %s166, %s167
      %p179 = scmp.eq.s32.totalorder %s26, 1
      %p180 = por %p178, %p179
      %p182 = scmp.ne.s32.totalorder %s167, %s181
      %p183 = scmp.eq.s32.totalorder %s26, 0
      %p184 = por %p182, %p183
      %s186 = sadd.s32 %s185, 1
      %p189 = scmp.eq.s32.totalorder %s20, 1
      %p190 = scmp.ne.s32.totalorder %s185, %s187
      %p191 = scmp.eq.s32.totalorder %s20, 0
      %p192 = por %p190, %p191
      %p193 = scmp.ne.s32.totalorder %s185, %s187
      %p194 = scmp.eq.s32.totalorder %s25, 1
      %p195 = por %p193, %p194
      %p196 = scmp.ne.s32.totalorder %s187, %s188
      %p197 = scmp.eq.s32.totalorder %s25, 0
      %p198 = por %p196, %p197
      %p199 = scmp.ne.s32.totalorder %s187, %s188
      %p200 = scmp.eq.s32.totalorder %s26, 1
      %p201 = por %p199, %p200
      %p203 = scmp.ne.s32.totalorder %s188, %s202
      %p204 = scmp.eq.s32.totalorder %s26, 0
      %p205 = por %p203, %p204
      %s207 = sadd.s32 %s206, 1
      %p210 = scmp.eq.s32.totalorder %s20, 1
      %p211 = scmp.ne.s32.totalorder %s206, %s208
      %p212 = scmp.eq.s32.totalorder %s20, 0
      %p213 = por %p211, %p212
      %p214 = scmp.ne.s32.totalorder %s206, %s208
      %p215 = scmp.eq.s32.totalorder %s25, 1
      %p216 = por %p214, %p215
      %p217 = scmp.ne.s32.totalorder %s208, %s209
      %p218 = scmp.eq.s32.totalorder %s25, 0
      %p219 = por %p217, %p218
      %p220 = scmp.ne.s32.totalorder %s208, %s209
      %p221 = scmp.eq.s32.totalorder %s26, 1
      %p222 = por %p220, %p221
      %p224 = scmp.ne.s32.totalorder %s209, %s223
      %p225 = scmp.eq.s32.totalorder %s26, 0
      %p226 = por %p224, %p225
      %s228 = sadd.s32 %s227, 1
      %p231 = scmp.eq.s32.totalorder %s20, 1
      %p232 = scmp.ne.s32.totalorder %s227, %s229
      %p233 = scmp.eq.s32.totalorder %s20, 0
      %p234 = por %p232, %p233
      %p235 = scmp.ne.s32.totalorder %s227, %s229
      %p236 = scmp.eq.s32.totalorder %s25, 1
      %p237 = por %p235, %p236
      %p238 = scmp.ne.s32.totalorder %s229, %s230
      %p239 = scmp.eq.s32.totalorder %s25, 0
      %p240 = por %p238, %p239
      %p241 = scmp.ne.s32.totalorder %s229, %s230
      %p242 = scmp.eq.s32.totalorder %s26, 1
      %p243 = por %p241, %p242
      %p245 = scmp.ne.s32.totalorder %s230, %s244
      %p246 = scmp.eq.s32.totalorder %s26, 0
      %p247 = por %p245, %p246
      %s249 = sadd.s32 %s248, 1
      %p252 = scmp.eq.s32.totalorder %s20, 1
      %p253 = scmp.ne.s32.totalorder %s248, %s250
      %p254 = scmp.eq.s32.totalorder %s20, 0
      %p255 = por %p253, %p254
      %p256 = scmp.ne.s32.totalorder %s248, %s250
      %p257 = scmp.eq.s32.totalorder %s25, 1
      %p258 = por %p256, %p257
      %p259 = scmp.ne.s32.totalorder %s250, %s251
      %p260 = scmp.eq.s32.totalorder %s25, 0
      %p261 = por %p259, %p260
      %p262 = scmp.ne.s32.totalorder %s250, %s251
      %p263 = scmp.eq.s32.totalorder %s26, 1
      %p264 = por %p262, %p263
      %p266 = scmp.ne.s32.totalorder %s251, %s265
      %p267 = scmp.eq.s32.totalorder %s26, 0
      %p268 = por %p266, %p267
      %s270 = sadd.s32 %s269, 1
      %p273 = scmp.eq.s32.totalorder %s20, 1
      %p274 = scmp.ne.s32.totalorder %s269, %s271
      %p275 = scmp.eq.s32.totalorder %s20, 0
      %p276 = por %p274, %p275
      %p277 = scmp.ne.s32.totalorder %s269, %s271
      %p278 = scmp.eq.s32.totalorder %s25, 1
      %p279 = por %p277, %p278
      %p280 = scmp.ne.s32.totalorder %s271, %s272
      %p281 = scmp.eq.s32.totalorder %s25, 0
      %p282 = por %p280, %p281
      %p283 = scmp.ne.s32.totalorder %s271, %s272
      %p284 = scmp.eq.s32.totalorder %s26, 1
      %p285 = por %p283, %p284
      %p287 = scmp.ne.s32.totalorder %s272, %s286
      %p288 = scmp.eq.s32.totalorder %s26, 0
      %p289 = por %p287, %p288
      %p290 = scmp.le.s32.totalorder 1, %s20
      %p291 = scmp.lt.s32.totalorder %s20, 3
      %p292 = pnand %p290, %p291
      %p293 = pneg %p292
      // Predicated region
      $region9: #{tpu_custom_call.1} parent=5 // pred_check
        _
      $region10: #{tpu_custom_call.1} parent=5 // pred_check_branch
        %295 = sbr.rel (%p292) target = $region12
      $region11: #{tpu_custom_call.1} parent=5 // pred_region
        %s296 = ssub.s32 %s20, 1
        // Predicated region
        $region13: #{tpu_custom_call.1} parent=11 // pred_check
          %p297 = pneg %p93
        $region14: #{tpu_custom_call.1} parent=11 // pred_check_branch
          %299 = sbr.rel (%p297) target = $region16
        $region15: #{tpu_custom_call.1} parent=11 // pred_region
          _
        $region16: #{tpu_custom_call.1} parent=11 // pred_fallthru
          _
        // Predicated region
        $region17: #{tpu_custom_call.1} parent=11 // pred_check
          %p300 = pneg %p114
        $region18: #{tpu_custom_call.1} parent=11 // pred_check_branch
          %302 = sbr.rel (%p300) target = $region20
        $region19: #{tpu_custom_call.1} parent=11 // pred_region
          _
        $region20: #{tpu_custom_call.1} parent=11 // pred_fallthru
          _
        // Predicated region
        $region21: #{tpu_custom_call.1} parent=11 // pred_check
          %p303 = pneg %p135
        $region22: #{tpu_custom_call.1} parent=11 // pred_check_branch
          %305 = sbr.rel (%p303) target = $region24
        $region23: #{tpu_custom_call.1} parent=11 // pred_region
          _
        $region24: #{tpu_custom_call.1} parent=11 // pred_fallthru
          _
        // Predicated region
        $region25: #{tpu_custom_call.1} parent=11 // pred_check
          %p306 = pneg %p156
        $region26: #{tpu_custom_call.1} parent=11 // pred_check_branch
          %308 = sbr.rel (%p306) target = $region28
        $region27: #{tpu_custom_call.1} parent=11 // pred_region
          _
        $region28: #{tpu_custom_call.1} parent=11 // pred_fallthru
          _
        // Predicated region
        $region29: #{tpu_custom_call.1} parent=11 // pred_check
          %p309 = pneg %p177
        $region30: #{tpu_custom_call.1} parent=11 // pred_check_branch
          %311 = sbr.rel (%p309) target = $region32
        $region31: #{tpu_custom_call.1} parent=11 // pred_region
          _
        $region32: #{tpu_custom_call.1} parent=11 // pred_fallthru
          _
        // Predicated region
        $region33: #{tpu_custom_call.1} parent=11 // pred_check
          %p312 = pneg %p198
        $region34: #{tpu_custom_call.1} parent=11 // pred_check_branch
          %314 = sbr.rel (%p312) target = $region36
        $region35: #{tpu_custom_call.1} parent=11 // pred_region
          _
        $region36: #{tpu_custom_call.1} parent=11 // pred_fallthru
          _
        // Predicated region
        $region37: #{tpu_custom_call.1} parent=11 // pred_check
          %p315 = pneg %p219
        $region38: #{tpu_custom_call.1} parent=11 // pred_check_branch
          %317 = sbr.rel (%p315) target = $region40
        $region39: #{tpu_custom_call.1} parent=11 // pred_region
          _
        $region40: #{tpu_custom_call.1} parent=11 // pred_fallthru
          _
        // Predicated region
        $region41: #{tpu_custom_call.1} parent=11 // pred_check
          %p318 = pneg %p240
        $region42: #{tpu_custom_call.1} parent=11 // pred_check_branch
          %320 = sbr.rel (%p318) target = $region44
        $region43: #{tpu_custom_call.1} parent=11 // pred_region
          _
        $region44: #{tpu_custom_call.1} parent=11 // pred_fallthru
          _
      $region12: #{tpu_custom_call.1} parent=5 // pred_fallthru
        _
      %p321 = scmp.lt.s32.totalorder %s20, 2
      // Predicated region
      $region45: #{tpu_custom_call.1} parent=5 // pred_check
        %p322 = pneg %p321
      $region46: #{tpu_custom_call.1} parent=5 // pred_check_branch
        %324 = sbr.rel (%p322) target = $region48
      $region47: #{tpu_custom_call.1} parent=5 // pred_region
        // Predicated region
        $region49: #{tpu_custom_call.1} parent=47 // pred_check
          %p325 = pneg %p40
        $region50: #{tpu_custom_call.1} parent=47 // pred_check_branch
          %327 = sbr.rel (%p325) target = $region52
        $region51: #{tpu_custom_call.1} parent=47 // pred_region
          %s328 = sand.u32 %s30, 1
          %s329 = sand.u32 %s30, 1
          %s330 = smul.addr %s329, 128
          %s331 = scalar_lea.vmem [#allocation6], %s330
          %s332 = smul.addr %s20, 8
          %s333 = scalar_lea.vmem %s0, %s332
          // Predicated region
          $region53: #{tpu_custom_call.1} parent=51 // pred_check
            _
          $region54: #{tpu_custom_call.1} parent=51 // pred_check_branch
            %335 = sbr.rel (0) target = $region56
          $region55: #{tpu_custom_call.1} parent=51 // pred_region
            // Predicated region
            $region57: #{tpu_custom_call.1} parent=55 // pred_check
              _
            $region58: #{tpu_custom_call.1} parent=55 // pred_check_branch
              %337 = sbr.rel (0) target = $region60
            $region59: #{tpu_custom_call.1} parent=55 // pred_region
              // Predicated region
              $region72: #{tpu_custom_call.1} parent=59 // pred_check
                _
              $region73: #{tpu_custom_call.1} parent=59 // pred_check_branch
                %382 = sbr.rel (0) target = $region75
              $region74: #{tpu_custom_call.1} parent=59 // pred_region
                loop: start=0, step=1, limit=1
                $region76: #{tpu_custom_call.1} parent=74 // loop_pre_header
                  _
                $region77: #{tpu_custom_call.1} parent=74 // loop_header
                  %s384 = sphi 0, %s388
                  %p385 = scmp.ge.s32.totalorder %s384, 1
                  %s389 = sphi %s333, %s333
                  %s390 = sphi %s331, %s331
                $region78: #{tpu_custom_call.1} parent=74 // loop_header_branch
                  %387 = sbr.rel (%p385) target = $region82
                $region79: #{tpu_custom_call.1} parent=74 // loop_body
                  %v391 = vld [vmem:[%s389] sm:$0xff]
                  %392 = vst [vmem:[%s390] sm:$0xff] %v391
                  %v393 = vld [vmem:[%s389 + $0x10] sm:$0xff]
                  %394 = vst [vmem:[%s390 + $0x8] sm:$0xff] %v393
                  %v395 = vld [vmem:[%s389 + $0x20] sm:$0xff]
                  %396 = vst [vmem:[%s390 + $0x10] sm:$0xff] %v395
                  %v397 = vld [vmem:[%s389 + $0x30] sm:$0xff]
                  %398 = vst [vmem:[%s390 + $0x18] sm:$0xff] %v397
                  %v399 = vld [vmem:[%s389 + $0x40] sm:$0xff]
                  %400 = vst [vmem:[%s390 + $0x20] sm:$0xff] %v399
                  %v401 = vld [vmem:[%s389 + $0x50] sm:$0xff]
                  %402 = vst [vmem:[%s390 + $0x28] sm:$0xff] %v401
                  %v403 = vld [vmem:[%s389 + $0x60] sm:$0xff]
                  %404 = vst [vmem:[%s390 + $0x30] sm:$0xff] %v403
                  %v405 = vld [vmem:[%s389 + $0x70] sm:$0xff]
                  %406 = vst [vmem:[%s390 + $0x38] sm:$0xff] %v405
                  %v407 = vld [vmem:[%s389 + $0x80] sm:$0xff]
                  %408 = vst [vmem:[%s390 + $0x40] sm:$0xff] %v407
                  %v409 = vld [vmem:[%s389 + $0x90] sm:$0xff]
                  %410 = vst [vmem:[%s390 + $0x48] sm:$0xff] %v409
                  %v411 = vld [vmem:[%s389 + $0xa0] sm:$0xff]
                  %412 = vst [vmem:[%s390 + $0x50] sm:$0xff] %v411
                  %v413 = vld [vmem:[%s389 + $0xb0] sm:$0xff]
                  %414 = vst [vmem:[%s390 + $0x58] sm:$0xff] %v413
                  %v415 = vld [vmem:[%s389 + $0xc0] sm:$0xff]
                  %416 = vst [vmem:[%s390 + $0x60] sm:$0xff] %v415
                  %v417 = vld [vmem:[%s389 + $0xd0] sm:$0xff]
                  %418 = vst [vmem:[%s390 + $0x68] sm:$0xff] %v417
                  %v419 = vld [vmem:[%s389 + $0xe0] sm:$0xff]
                  %420 = vst [vmem:[%s390 + $0x70] sm:$0xff] %v419
                  %v421 = vld [vmem:[%s389 + $0xf0] sm:$0xff]
                  %422 = vst [vmem:[%s390 + $0x78] sm:$0xff] %v421
                $region80: #{tpu_custom_call.1} parent=74 // loop_footer
                  %s388 = sadd.s32 1, %s384
                $region81: #{tpu_custom_call.1} parent=74 // loop_footer_branch
                  %383 = sbr.rel target = $region77
                $region82: #{tpu_custom_call.1} parent=74 // loop_exit
                  _
              $region75: #{tpu_custom_call.1} parent=59 // pred_fallthru
                _
              // Predicated region
              $region83: #{tpu_custom_call.1} parent=59 // pred_check
                _
              $region84: #{tpu_custom_call.1} parent=59 // pred_check_branch
                %424 = sbr.rel target = $region86
              $region85: #{tpu_custom_call.1} parent=59 // pred_region
                _
              $region86: #{tpu_custom_call.1} parent=59 // pred_fallthru
                _
            $region60: #{tpu_custom_call.1} parent=55 // pred_fallthru
              _
            // Predicated region
            $region61: #{tpu_custom_call.1} parent=55 // pred_check
              _
            $region62: #{tpu_custom_call.1} parent=55 // pred_check_branch
              %339 = sbr.rel target = $region64
            $region63: #{tpu_custom_call.1} parent=55 // pred_region
              loop: start=0, step=1, limit=1
              $region65: #{tpu_custom_call.1} parent=63 // loop_pre_header
                _
              $region66: #{tpu_custom_call.1} parent=63 // loop_header
                %s342 = sphi 0, %s346
                %p343 = scmp.ge.s32.totalorder %s342, 1
                %s347 = sphi %s333, %s333
                %s348 = sphi %s331, %s331
              $region67: #{tpu_custom_call.1} parent=63 // loop_header_branch
                %345 = sbr.rel (%p343) target = $region71
              $region68: #{tpu_custom_call.1} parent=63 // loop_body
                %v349 = vld [vmem:[%s347] sm:$0xff]
                %350 = vst [vmem:[%s348] sm:$0xff] %v349
                %v351 = vld [vmem:[%s347 + $0x10] sm:$0xff]
                %352 = vst [vmem:[%s348 + $0x8] sm:$0xff] %v351
                %v353 = vld [vmem:[%s347 + $0x20] sm:$0xff]
                %354 = vst [vmem:[%s348 + $0x10] sm:$0xff] %v353
                %v355 = vld [vmem:[%s347 + $0x30] sm:$0xff]
                %356 = vst [vmem:[%s348 + $0x18] sm:$0xff] %v355
                %v357 = vld [vmem:[%s347 + $0x40] sm:$0xff]
                %358 = vst [vmem:[%s348 + $0x20] sm:$0xff] %v357
                %v359 = vld [vmem:[%s347 + $0x50] sm:$0xff]
                %360 = vst [vmem:[%s348 + $0x28] sm:$0xff] %v359
                %v361 = vld [vmem:[%s347 + $0x60] sm:$0xff]
                %362 = vst [vmem:[%s348 + $0x30] sm:$0xff] %v361
                %v363 = vld [vmem:[%s347 + $0x70] sm:$0xff]
                %364 = vst [vmem:[%s348 + $0x38] sm:$0xff] %v363
                %v365 = vld [vmem:[%s347 + $0x80] sm:$0xff]
                %366 = vst [vmem:[%s348 + $0x40] sm:$0xff] %v365
                %v367 = vld [vmem:[%s347 + $0x90] sm:$0xff]
                %368 = vst [vmem:[%s348 + $0x48] sm:$0xff] %v367
                %v369 = vld [vmem:[%s347 + $0xa0] sm:$0xff]
                %370 = vst [vmem:[%s348 + $0x50] sm:$0xff] %v369
                %v371 = vld [vmem:[%s347 + $0xb0] sm:$0xff]
                %372 = vst [vmem:[%s348 + $0x58] sm:$0xff] %v371
                %v373 = vld [vmem:[%s347 + $0xc0] sm:$0xff]
                %374 = vst [vmem:[%s348 + $0x60] sm:$0xff] %v373
                %v375 = vld [vmem:[%s347 + $0xd0] sm:$0xff]
                %376 = vst [vmem:[%s348 + $0x68] sm:$0xff] %v375
                %v377 = vld [vmem:[%s347 + $0xe0] sm:$0xff]
                %378 = vst [vmem:[%s348 + $0x70] sm:$0xff] %v377
                %v379 = vld [vmem:[%s347 + $0xf0] sm:$0xff]
                %380 = vst [vmem:[%s348 + $0x78] sm:$0xff] %v379
              $region69: #{tpu_custom_call.1} parent=63 // loop_footer
                %s346 = sadd.s32 1, %s342
              $region70: #{tpu_custom_call.1} parent=63 // loop_footer_branch
                %341 = sbr.rel target = $region66
              $region71: #{tpu_custom_call.1} parent=63 // loop_exit
                _
            $region64: #{tpu_custom_call.1} parent=55 // pred_fallthru
              _
          $region56: #{tpu_custom_call.1} parent=51 // pred_fallthru
            _
          %425 = vnop
        $region52: #{tpu_custom_call.1} parent=47 // pred_fallthru
          _
        // Predicated region
        $region87: #{tpu_custom_call.1} parent=47 // pred_check
          %p426 = pneg %p66
        $region88: #{tpu_custom_call.1} parent=47 // pred_check_branch
          %428 = sbr.rel (%p426) target = $region90
        $region89: #{tpu_custom_call.1} parent=47 // pred_region
          %s429 = sand.u32 %s56, 1
          %s430 = sand.u32 %s56, 1
          %s431 = smul.addr %s430, 128
          %s432 = scalar_lea.vmem [#allocation7], %s431
          %s433 = smul.addr %s20, 8
          %s434 = scalar_lea.vmem %s1, %s433
          // Predicated region
          $region91: #{tpu_custom_call.1} parent=89 // pred_check
            _
          $region92: #{tpu_custom_call.1} parent=89 // pred_check_branch
            %436 = sbr.rel (0) target = $region94
          $region93: #{tpu_custom_call.1} parent=89 // pred_region
            // Predicated region
            $region95: #{tpu_custom_call.1} parent=93 // pred_check
              _
            $region96: #{tpu_custom_call.1} parent=93 // pred_check_branch
              %438 = sbr.rel (0) target = $region98
            $region97: #{tpu_custom_call.1} parent=93 // pred_region
              // Predicated region
              $region110: #{tpu_custom_call.1} parent=97 // pred_check
                _
              $region111: #{tpu_custom_call.1} parent=97 // pred_check_branch
                %483 = sbr.rel (0) target = $region113
              $region112: #{tpu_custom_call.1} parent=97 // pred_region
                loop: start=0, step=1, limit=1
                $region114: #{tpu_custom_call.1} parent=112 // loop_pre_header
                  _
                $region115: #{tpu_custom_call.1} parent=112 // loop_header
                  %s485 = sphi 0, %s489
                  %p486 = scmp.ge.s32.totalorder %s485, 1
                  %s490 = sphi %s434, %s434
                  %s491 = sphi %s432, %s432
                $region116: #{tpu_custom_call.1} parent=112 // loop_header_branch
                  %488 = sbr.rel (%p486) target = $region120
                $region117: #{tpu_custom_call.1} parent=112 // loop_body
                  %v492 = vld [vmem:[%s490] sm:$0xff]
                  %493 = vst [vmem:[%s491] sm:$0xff] %v492
                  %v494 = vld [vmem:[%s490 + $0x10] sm:$0xff]
                  %495 = vst [vmem:[%s491 + $0x8] sm:$0xff] %v494
                  %v496 = vld [vmem:[%s490 + $0x20] sm:$0xff]
                  %497 = vst [vmem:[%s491 + $0x10] sm:$0xff] %v496
                  %v498 = vld [vmem:[%s490 + $0x30] sm:$0xff]
                  %499 = vst [vmem:[%s491 + $0x18] sm:$0xff] %v498
                  %v500 = vld [vmem:[%s490 + $0x40] sm:$0xff]
                  %501 = vst [vmem:[%s491 + $0x20] sm:$0xff] %v500
                  %v502 = vld [vmem:[%s490 + $0x50] sm:$0xff]
                  %503 = vst [vmem:[%s491 + $0x28] sm:$0xff] %v502
                  %v504 = vld [vmem:[%s490 + $0x60] sm:$0xff]
                  %505 = vst [vmem:[%s491 + $0x30] sm:$0xff] %v504
                  %v506 = vld [vmem:[%s490 + $0x70] sm:$0xff]
                  %507 = vst [vmem:[%s491 + $0x38] sm:$0xff] %v506
                  %v508 = vld [vmem:[%s490 + $0x80] sm:$0xff]
                  %509 = vst [vmem:[%s491 + $0x40] sm:$0xff] %v508
                  %v510 = vld [vmem:[%s490 + $0x90] sm:$0xff]
                  %511 = vst [vmem:[%s491 + $0x48] sm:$0xff] %v510
                  %v512 = vld [vmem:[%s490 + $0xa0] sm:$0xff]
                  %513 = vst [vmem:[%s491 + $0x50] sm:$0xff] %v512
                  %v514 = vld [vmem:[%s490 + $0xb0] sm:$0xff]
                  %515 = vst [vmem:[%s491 + $0x58] sm:$0xff] %v514
                  %v516 = vld [vmem:[%s490 + $0xc0] sm:$0xff]
                  %517 = vst [vmem:[%s491 + $0x60] sm:$0xff] %v516
                  %v518 = vld [vmem:[%s490 + $0xd0] sm:$0xff]
                  %519 = vst [vmem:[%s491 + $0x68] sm:$0xff] %v518
                  %v520 = vld [vmem:[%s490 + $0xe0] sm:$0xff]
                  %521 = vst [vmem:[%s491 + $0x70] sm:$0xff] %v520
                  %v522 = vld [vmem:[%s490 + $0xf0] sm:$0xff]
                  %523 = vst [vmem:[%s491 + $0x78] sm:$0xff] %v522
                $region118: #{tpu_custom_call.1} parent=112 // loop_footer
                  %s489 = sadd.s32 1, %s485
                $region119: #{tpu_custom_call.1} parent=112 // loop_footer_branch
                  %484 = sbr.rel target = $region115
                $region120: #{tpu_custom_call.1} parent=112 // loop_exit
                  _
              $region113: #{tpu_custom_call.1} parent=97 // pred_fallthru
                _
              // Predicated region
              $region121: #{tpu_custom_call.1} parent=97 // pred_check
                _
              $region122: #{tpu_custom_call.1} parent=97 // pred_check_branch
                %525 = sbr.rel target = $region124
              $region123: #{tpu_custom_call.1} parent=97 // pred_region
                _
              $region124: #{tpu_custom_call.1} parent=97 // pred_fallthru
                _
            $region98: #{tpu_custom_call.1} parent=93 // pred_fallthru
              _
            // Predicated region
            $region99: #{tpu_custom_call.1} parent=93 // pred_check
              _
            $region100: #{tpu_custom_call.1} parent=93 // pred_check_branch
              %440 = sbr.rel target = $region102
            $region101: #{tpu_custom_call.1} parent=93 // pred_region
              loop: start=0, step=1, limit=1
              $region103: #{tpu_custom_call.1} parent=101 // loop_pre_header
                _
              $region104: #{tpu_custom_call.1} parent=101 // loop_header
                %s443 = sphi 0, %s447
                %p444 = scmp.ge.s32.totalorder %s443, 1
                %s448 = sphi %s434, %s434
                %s449 = sphi %s432, %s432
              $region105: #{tpu_custom_call.1} parent=101 // loop_header_branch
                %446 = sbr.rel (%p444) target = $region109
              $region106: #{tpu_custom_call.1} parent=101 // loop_body
                %v450 = vld [vmem:[%s448] sm:$0xff]
                %451 = vst [vmem:[%s449] sm:$0xff] %v450
                %v452 = vld [vmem:[%s448 + $0x10] sm:$0xff]
                %453 = vst [vmem:[%s449 + $0x8] sm:$0xff] %v452
                %v454 = vld [vmem:[%s448 + $0x20] sm:$0xff]
                %455 = vst [vmem:[%s449 + $0x10] sm:$0xff] %v454
                %v456 = vld [vmem:[%s448 + $0x30] sm:$0xff]
                %457 = vst [vmem:[%s449 + $0x18] sm:$0xff] %v456
                %v458 = vld [vmem:[%s448 + $0x40] sm:$0xff]
                %459 = vst [vmem:[%s449 + $0x20] sm:$0xff] %v458
                %v460 = vld [vmem:[%s448 + $0x50] sm:$0xff]
                %461 = vst [vmem:[%s449 + $0x28] sm:$0xff] %v460
                %v462 = vld [vmem:[%s448 + $0x60] sm:$0xff]
                %463 = vst [vmem:[%s449 + $0x30] sm:$0xff] %v462
                %v464 = vld [vmem:[%s448 + $0x70] sm:$0xff]
                %465 = vst [vmem:[%s449 + $0x38] sm:$0xff] %v464
                %v466 = vld [vmem:[%s448 + $0x80] sm:$0xff]
                %467 = vst [vmem:[%s449 + $0x40] sm:$0xff] %v466
                %v468 = vld [vmem:[%s448 + $0x90] sm:$0xff]
                %469 = vst [vmem:[%s449 + $0x48] sm:$0xff] %v468
                %v470 = vld [vmem:[%s448 + $0xa0] sm:$0xff]
                %471 = vst [vmem:[%s449 + $0x50] sm:$0xff] %v470
                %v472 = vld [vmem:[%s448 + $0xb0] sm:$0xff]
                %473 = vst [vmem:[%s449 + $0x58] sm:$0xff] %v472
                %v474 = vld [vmem:[%s448 + $0xc0] sm:$0xff]
                %475 = vst [vmem:[%s449 + $0x60] sm:$0xff] %v474
                %v476 = vld [vmem:[%s448 + $0xd0] sm:$0xff]
                %477 = vst [vmem:[%s449 + $0x68] sm:$0xff] %v476
                %v478 = vld [vmem:[%s448 + $0xe0] sm:$0xff]
                %479 = vst [vmem:[%s449 + $0x70] sm:$0xff] %v478
                %v480 = vld [vmem:[%s448 + $0xf0] sm:$0xff]
                %481 = vst [vmem:[%s449 + $0x78] sm:$0xff] %v480
              $region107: #{tpu_custom_call.1} parent=101 // loop_footer
                %s447 = sadd.s32 1, %s443
              $region108: #{tpu_custom_call.1} parent=101 // loop_footer_branch
                %442 = sbr.rel target = $region104
              $region109: #{tpu_custom_call.1} parent=101 // loop_exit
                _
            $region102: #{tpu_custom_call.1} parent=93 // pred_fallthru
              _
          $region94: #{tpu_custom_call.1} parent=89 // pred_fallthru
            _
          %526 = vnop
        $region90: #{tpu_custom_call.1} parent=47 // pred_fallthru
          _
      $region48: #{tpu_custom_call.1} parent=5 // pred_fallthru
        _
      %p527 = scmp.le.s32.totalorder 1, %s20
      %p528 = scmp.lt.s32.totalorder %s20, 3
      %p529 = pnand %p527, %p528
      %p530 = pneg %p529
      // Predicated region
      $region125: #{tpu_custom_call.1} parent=5 // pred_check
        _
      $region126: #{tpu_custom_call.1} parent=5 // pred_check_branch
        %532 = sbr.rel (%p529) target = $region128
      $region127: #{tpu_custom_call.1} parent=5 // pred_region
        %s533 = ssub.s32 %s20, 1
        %s534 = sand.u32 %s33, 1
        %s535 = sand.u32 %s33, 1
        %s536 = smul.addr %s535, 128
        %s537 = scalar_lea.vmem [#allocation6], %s536
        // Predicated region
        $region129: #{tpu_custom_call.1} parent=127 // pred_check
          %p538 = pneg %p46
        $region130: #{tpu_custom_call.1} parent=127 // pred_check_branch
          %540 = sbr.rel (%p538) target = $region132
        $region131: #{tpu_custom_call.1} parent=127 // pred_region
          _
        $region132: #{tpu_custom_call.1} parent=127 // pred_fallthru
          _
        %s541 = sand.u32 %s59, 1
        %s542 = sand.u32 %s59, 1
        %s543 = smul.addr %s542, 128
        %s544 = scalar_lea.vmem [#allocation7], %s543
        // Predicated region
        $region133: #{tpu_custom_call.1} parent=127 // pred_check
          %p545 = pneg %p72
        $region134: #{tpu_custom_call.1} parent=127 // pred_check_branch
          %547 = sbr.rel (%p545) target = $region136
        $region135: #{tpu_custom_call.1} parent=127 // pred_region
          _
        $region136: #{tpu_custom_call.1} parent=127 // pred_fallthru
          _
        %s548 = sand.u32 %s33, 1
        %s549 = sand.u32 %s33, 1
        %s550 = smul.addr %s549, 128
        %s551 = scalar_lea.vmem [#allocation6], %s550
        %p552 = pneg %p46
        %p553 = pneg %p43
        %s554 = sand.u32 %s59, 1
        %s555 = sand.u32 %s59, 1
        %s556 = smul.addr %s555, 128
        %s557 = scalar_lea.vmem [#allocation7], %s556
        %p558 = pneg %p72
        %p559 = pneg %p69
        %p560 = pneg %p93
        %p561 = pneg %p90
        %p562 = pneg %p114
        %p563 = pneg %p111
        %p564 = pneg %p135
        %p565 = pneg %p132
        %p566 = pneg %p156
        %p567 = pneg %p153
        %p568 = pneg %p177
        %p569 = pneg %p174
        %p570 = pneg %p198
        %p571 = pneg %p195
        %p572 = pneg %p219
        %p573 = pneg %p216
        %p574 = pneg %p240
        %p575 = pneg %p237
        %p576 = pneg %p261
        %p577 = pneg %p258
        %p578 = pneg %p282
        %p579 = pneg %p279
        %v581 = vld [vmem:[%s3] sm:$0xff]
        %v582 = vld [vmem:[%s3 + $0x8] sm:$0xff]
        %p583 = scmp.eq.s32.totalorder %s25, 0
        // Predicated region
        $region137: #{tpu_custom_call.1} parent=127 // pred_check
          %p584 = pneg %p583
        $region138: #{tpu_custom_call.1} parent=127 // pred_check_branch
          %586 = sbr.rel (%p584) target = $region140
        $region139: #{tpu_custom_call.1} parent=127 // pred_region
          %v587 = vpack.c.bf16 %v582, %v581
          %v588 = vld [vmem:[%s4] sm:$0xf]
          %v589 = vld [vmem:[%s4 + $0x4] sm:$0xf]
          %v592 = vunpack.c.l.b16 %v588
          %v593 = vunpack.c.l.b16 %v589
          %v594 = vpack.c.b16 %v593, %v592
          %vm596 = vcmask 130048
          %v598 = vsel %vm596, %v587, 0
          %600 = vmatprep.subr.bf16.mxu0 0
          %601 = vmatpush1.bf16.msra.mxu0 %v594
          %602 = vmatprep.subr.bf16.mxu0 0
          %603 = vmatpush1.bf16.msra.mxu0 0
          %604 = vmatprep.subr.bf16.mxu0 0
          %605 = vmatpush1.bf16.msra.mxu0 0
          %606 = vmatprep.subr.bf16.mxu0 0
          %607 = vmatpush1.bf16.msra.mxu0 0
          %608 = vmatprep.subr.bf16.mxu0 0
          %609 = vmatpush1.bf16.msra.mxu0 0
          %610 = vmatprep.subr.bf16.mxu0 0
          %611 = vmatpush1.bf16.msra.mxu0 0
          %612 = vmatprep.subr.bf16.mxu0 0
          %613 = vmatpush1.bf16.msra.mxu0 0
          %614 = vmatprep.subr.bf16.mxu0 0
          %615 = vmatpush1.bf16.msra.mxu0 0
          %616 = vmatprep.subr.bf16.mxu0 0
          %617 = vmatpush1.bf16.msra.mxu0 0
          %618 = vmatprep.subr.bf16.mxu0 0
          %619 = vmatpush1.bf16.msra.mxu0 0
          %620 = vmatprep.subr.bf16.mxu0 0
          %621 = vmatpush1.bf16.msra.mxu0 0
          %622 = vmatprep.subr.bf16.mxu0 0
          %623 = vmatpush1.bf16.msra.mxu0 0
          %624 = vmatprep.subr.bf16.mxu0 0
          %625 = vmatpush1.bf16.msra.mxu0 0
          %626 = vmatprep.subr.bf16.mxu0 0
          %627 = vmatpush1.bf16.msra.mxu0 0
          %628 = vmatprep.subr.bf16.mxu0 0
          %629 = vmatpush1.bf16.msra.mxu0 0
          %630 = vmatprep.subr.bf16.mxu0 0
          %631 = vmatpush1.bf16.msra.mxu0 0
          %632 = vmatprep.mubr.bf16.mxu0 0
          %633 = vmatmul.mubr.bf16.gmra.mrb[0].mxu0 %v598
          %v634 = vpop.f32.mrb[0].mxu0
          %v635 = vadd.f32 0.0, %v634
          %v636 = vpop.f32.mrb[0].mxu0
          %v637 = vpop.f32.mrb[0].mxu0
          %v638 = vadd.f32 0.0, %v637
          %v639 = vpop.f32.mrb[0].mxu0
          %640 = vdwg.mxu0
          %vm641 = vcmask 64512
          %642 = vst.msk [vmem:[#allocation2] sm:$0xff] %vm641, %v635
          %643 = vst.msk [vmem:[#allocation2 + $0x8] sm:$0xff] %vm641, %v638
          %vm644 = vcmask 7168
          %645 = vst.msk [vmem:[#allocation3] sm:$0xff] %vm644, -1e+30
          %646 = vst.msk [vmem:[#allocation3 + $0x8] sm:$0xff] %vm644, -1e+30
          %647 = vst.msk [vmem:[#allocation4] sm:$0xff] %vm644, 0.0
          %648 = vst.msk [vmem:[#allocation4 + $0x8] sm:$0xff] %vm644, 0.0
          %649 = vst.msk [vmem:[#allocation5] sm:$0xff] %vm596, 0.0
          %650 = vst.msk [vmem:[#allocation5 + $0x8] sm:$0xff] %vm596, 0.0
        $region140: #{tpu_custom_call.1} parent=127 // pred_fallthru
          _
        %v651 = vld [vmem:[%s544] sm:$0xff]
        %v652 = vld [vmem:[%s544 + $0x8] sm:$0xff]
        %v653 = vld [vmem:[%s544 + $0x10] sm:$0xff]
        %v654 = vld [vmem:[%s544 + $0x18] sm:$0xff]
        %v655 = vld [vmem:[%s544 + $0x20] sm:$0xff]
        %v656 = vld [vmem:[%s544 + $0x28] sm:$0xff]
        %v657 = vld [vmem:[%s544 + $0x30] sm:$0xff]
        %v658 = vld [vmem:[%s544 + $0x38] sm:$0xff]
        %v659 = vld [vmem:[%s544 + $0x40] sm:$0xff]
        %v660 = vld [vmem:[%s544 + $0x48] sm:$0xff]
        %v661 = vld [vmem:[%s544 + $0x50] sm:$0xff]
        %v662 = vld [vmem:[%s544 + $0x58] sm:$0xff]
        %v663 = vld [vmem:[%s544 + $0x60] sm:$0xff]
        %v664 = vld [vmem:[%s544 + $0x68] sm:$0xff]
        %v665 = vld [vmem:[%s544 + $0x70] sm:$0xff]
        %v666 = vld [vmem:[%s544 + $0x78] sm:$0xff]
        %v667 = vld [vmem:[%s537] sm:$0xff]
        %v668 = vld [vmem:[%s537 + $0x8] sm:$0xff]
        %v669 = vld [vmem:[%s537 + $0x10] sm:$0xff]
        %v670 = vld [vmem:[%s537 + $0x18] sm:$0xff]
        %v671 = vld [vmem:[%s537 + $0x20] sm:$0xff]
        %v672 = vld [vmem:[%s537 + $0x28] sm:$0xff]
        %v673 = vld [vmem:[%s537 + $0x30] sm:$0xff]
        %v674 = vld [vmem:[%s537 + $0x38] sm:$0xff]
        %v675 = vld [vmem:[%s537 + $0x40] sm:$0xff]
        %v676 = vld [vmem:[%s537 + $0x48] sm:$0xff]
        %v677 = vld [vmem:[%s537 + $0x50] sm:$0xff]
        %v678 = vld [vmem:[%s537 + $0x58] sm:$0xff]
        %v679 = vld [vmem:[%s537 + $0x60] sm:$0xff]
        %v680 = vld [vmem:[%s537 + $0x68] sm:$0xff]
        %v681 = vld [vmem:[%s537 + $0x70] sm:$0xff]
        %v682 = vld [vmem:[%s537 + $0x78] sm:$0xff]
        %v683 = vld [vmem:[#allocation2] sm:$0xff]
        %v684 = vld [vmem:[#allocation2 + $0x8] sm:$0xff]
        %v687 = vcombine.high %v683, %v683
        %v689 = vunpack.c.l.s4 1966171168
        %v690 = vunpack.c.0.s8 %v689
        %v691 = vlaneseq
        %v692 = vshrl.u32 %v691, 7
        %v693 = vsub.s32 %v690, %v692
        %v694 = vrot.slane %v683, %v693
        %v696 = vunpack.c.l.s4 1966171168
        %v697 = vunpack.c.0.s8 %v696
        %v698 = vlaneseq
        %v699 = vshrl.u32 %v698, 7
        %v700 = vsub.s32 %v697, %v699
        %v701 = vrot.slane %v687, %v700
        %v702 = vcombine.high %v694, %v694
        %v703 = vcombine.high %v701, %v701
        %v705 = vunpack.c.l.s4 1966171168
        %v706 = vunpack.c.0.s8 %v705
        %v707 = vlaneseq
        %v708 = vshrl.u32 %v707, 7
        %v709 = vsub.s32 %v706, %v708
        %v710 = vrot.slane %v694, %v709
        %v712 = vunpack.c.l.s4 1966171168
        %v713 = vunpack.c.0.s8 %v712
        %v714 = vlaneseq
        %v715 = vshrl.u32 %v714, 7
        %v716 = vsub.s32 %v713, %v715
        %v717 = vrot.slane %v701, %v716
        %v719 = vunpack.c.l.s4 1966171168
        %v720 = vunpack.c.0.s8 %v719
        %v721 = vlaneseq
        %v722 = vshrl.u32 %v721, 7
        %v723 = vsub.s32 %v720, %v722
        %v724 = vrot.slane %v702, %v723
        %v726 = vunpack.c.l.s4 1966171168
        %v727 = vunpack.c.0.s8 %v726
        %v728 = vlaneseq
        %v729 = vshrl.u32 %v728, 7
        %v730 = vsub.s32 %v727, %v729
        %v731 = vrot.slane %v703, %v730
        %v732 = vcombine.high %v710, %v710
        %v733 = vcombine.high %v717, %v717
        %v734 = vcombine.high %v724, %v724
        %v735 = vcombine.high %v731, %v731
        %v736 = vcombine.high %v684, %v684
        %v738 = vunpack.c.l.s4 1966171168
        %v739 = vunpack.c.0.s8 %v738
        %v740 = vlaneseq
        %v741 = vshrl.u32 %v740, 7
        %v742 = vsub.s32 %v739, %v741
        %v743 = vrot.slane %v684, %v742
        %v745 = vunpack.c.l.s4 1966171168
        %v746 = vunpack.c.0.s8 %v745
        %v747 = vlaneseq
        %v748 = vshrl.u32 %v747, 7
        %v749 = vsub.s32 %v746, %v748
        %v750 = vrot.slane %v736, %v749
        %v751 = vcombine.high %v743, %v743
        %v752 = vcombine.high %v750, %v750
        %v754 = vunpack.c.l.s4 1966171168
        %v755 = vunpack.c.0.s8 %v754
        %v756 = vlaneseq
        %v757 = vshrl.u32 %v756, 7
        %v758 = vsub.s32 %v755, %v757
        %v759 = vrot.slane %v743, %v758
        %v761 = vunpack.c.l.s4 1966171168
        %v762 = vunpack.c.0.s8 %v761
        %v763 = vlaneseq
        %v764 = vshrl.u32 %v763, 7
        %v765 = vsub.s32 %v762, %v764
        %v766 = vrot.slane %v750, %v765
        %v768 = vunpack.c.l.s4 1966171168
        %v769 = vunpack.c.0.s8 %v768
        %v770 = vlaneseq
        %v771 = vshrl.u32 %v770, 7
        %v772 = vsub.s32 %v769, %v771
        %v773 = vrot.slane %v751, %v772
        %v775 = vunpack.c.l.s4 1966171168
        %v776 = vunpack.c.0.s8 %v775
        %v777 = vlaneseq
        %v778 = vshrl.u32 %v777, 7
        %v779 = vsub.s32 %v776, %v778
        %v780 = vrot.slane %v752, %v779
        %v781 = vcombine.high %v759, %v759
        %v782 = vcombine.high %v766, %v766
        %v783 = vcombine.high %v773, %v773
        %v784 = vcombine.high %v780, %v780
        %v785 = vlaneseq
        %v786 = vshrl.u32 %v785, 7
        %v787 = vsub.s32 0, %v786
        %v788 = vrot.slane %v710, %v787
        %v789 = vlaneseq
        %v790 = vshrl.u32 %v789, 7
        %v791 = vsub.s32 0, %v790
        %v792 = vrot.slane %v724, %v791
        %v793 = vlaneseq
        %v794 = vshrl.u32 %v793, 7
        %v795 = vsub.s32 0, %v794
        %v796 = vrot.slane %v732, %v795
        %v797 = vlaneseq
        %v798 = vshrl.u32 %v797, 7
        %v799 = vsub.s32 0, %v798
        %v800 = vrot.slane %v734, %v799
        %v801 = vlaneseq
        %v802 = vshrl.u32 %v801, 7
        %v803 = vsub.s32 0, %v802
        %v804 = vrot.slane %v717, %v803
        %v805 = vlaneseq
        %v806 = vshrl.u32 %v805, 7
        %v807 = vsub.s32 0, %v806
        %v808 = vrot.slane %v731, %v807
        %v809 = vlaneseq
        %v810 = vshrl.u32 %v809, 7
        %v811 = vsub.s32 0, %v810
        %v812 = vrot.slane %v733, %v811
        %v813 = vlaneseq
        %v814 = vshrl.u32 %v813, 7
        %v815 = vsub.s32 0, %v814
        %v816 = vrot.slane %v735, %v815
        %v817 = vlaneseq
        %v818 = vshrl.u32 %v817, 7
        %v819 = vsub.s32 0, %v818
        %v820 = vrot.slane %v759, %v819
        %v821 = vlaneseq
        %v822 = vshrl.u32 %v821, 7
        %v823 = vsub.s32 0, %v822
        %v824 = vrot.slane %v773, %v823
        %v825 = vlaneseq
        %v826 = vshrl.u32 %v825, 7
        %v827 = vsub.s32 0, %v826
        %v828 = vrot.slane %v781, %v827
        %v829 = vlaneseq
        %v830 = vshrl.u32 %v829, 7
        %v831 = vsub.s32 0, %v830
        %v832 = vrot.slane %v783, %v831
        %v833 = vlaneseq
        %v834 = vshrl.u32 %v833, 7
        %v835 = vsub.s32 0, %v834
        %v836 = vrot.slane %v766, %v835
        %v837 = vlaneseq
        %v838 = vshrl.u32 %v837, 7
        %v839 = vsub.s32 0, %v838
        %v840 = vrot.slane %v780, %v839
        %v841 = vlaneseq
        %v842 = vshrl.u32 %v841, 7
        %v843 = vsub.s32 0, %v842
        %v844 = vrot.slane %v782, %v843
        %v845 = vlaneseq
        %v846 = vshrl.u32 %v845, 7
        %v847 = vsub.s32 0, %v846
        %v848 = vrot.slane %v784, %v847
        %v865 = vadd.f32 %v667, %v788
        %v866 = vadd.f32 %v668, %v792
        %v867 = vadd.f32 %v669, %v796
        %v868 = vadd.f32 %v670, %v800
        %v869 = vadd.f32 %v671, %v804
        %v870 = vadd.f32 %v672, %v808
        %v871 = vadd.f32 %v673, %v812
        %v872 = vadd.f32 %v674, %v816
        %v873 = vadd.f32 %v675, %v820
        %v874 = vadd.f32 %v676, %v824
        %v875 = vadd.f32 %v677, %v828
        %v876 = vadd.f32 %v678, %v832
        %v877 = vadd.f32 %v679, %v836
        %v878 = vadd.f32 %v680, %v840
        %v879 = vadd.f32 %v681, %v844
        %v880 = vadd.f32 %v682, %v848
        %v881 = vtanh.pop %v865
        %v882 = vtanh.pop %v866
        %v883 = vtanh.pop %v867
        %v884 = vtanh.pop %v868
        %v885 = vtanh.pop %v869
        %v886 = vtanh.pop %v870
        %v887 = vtanh.pop %v871
        %v888 = vtanh.pop %v872
        %v889 = vtanh.pop %v873
        %v890 = vtanh.pop %v874
        %v891 = vtanh.pop %v875
        %v892 = vtanh.pop %v876
        %v893 = vtanh.pop %v877
        %v894 = vtanh.pop %v878
        %v895 = vtanh.pop %v879
        %v896 = vtanh.pop %v880
        %vm897 = vcmask 64512
        %v898 = vsel %vm897, %v881, 0.0
        %899 = vadd.xlane.f32.xlu0 %v898
        %v900 = vpop.xlane.xlu0 %899
        %v901 = vsel %vm897, %v882, 0.0
        %902 = vadd.xlane.f32.xlu0 %v901
        %v903 = vpop.xlane.xlu0 %902
        %v904 = vsel %vm897, %v883, 0.0
        %905 = vadd.xlane.f32.xlu0 %v904
        %v906 = vpop.xlane.xlu0 %905
        %v907 = vsel %vm897, %v884, 0.0
        %908 = vadd.xlane.f32.xlu0 %v907
        %v909 = vpop.xlane.xlu0 %908
        %v910 = vsel %vm897, %v885, 0.0
        %911 = vadd.xlane.f32.xlu0 %v910
        %v912 = vpop.xlane.xlu0 %911
        %v913 = vsel %vm897, %v886, 0.0
        %914 = vadd.xlane.f32.xlu0 %v913
        %v915 = vpop.xlane.xlu0 %914
        %v916 = vsel %vm897, %v887, 0.0
        %917 = vadd.xlane.f32.xlu0 %v916
        %v918 = vpop.xlane.xlu0 %917
        %v919 = vsel %vm897, %v888, 0.0
        %920 = vadd.xlane.f32.xlu0 %v919
        %v921 = vpop.xlane.xlu0 %920
        %v922 = vsel %vm897, %v889, 0.0
        %923 = vadd.xlane.f32.xlu0 %v922
        %v924 = vpop.xlane.xlu0 %923
        %v925 = vsel %vm897, %v890, 0.0
        %926 = vadd.xlane.f32.xlu0 %v925
        %v927 = vpop.xlane.xlu0 %926
        %v928 = vsel %vm897, %v891, 0.0
        %929 = vadd.xlane.f32.xlu0 %v928
        %v930 = vpop.xlane.xlu0 %929
        %v931 = vsel %vm897, %v892, 0.0
        %932 = vadd.xlane.f32.xlu0 %v931
        %v933 = vpop.xlane.xlu0 %932
        %v934 = vsel %vm897, %v893, 0.0
        %935 = vadd.xlane.f32.xlu0 %v934
        %v936 = vpop.xlane.xlu0 %935
        %v937 = vsel %vm897, %v894, 0.0
        %938 = vadd.xlane.f32.xlu0 %v937
        %v939 = vpop.xlane.xlu0 %938
        %v940 = vsel %vm897, %v895, 0.0
        %941 = vadd.xlane.f32.xlu0 %v940
        %v942 = vpop.xlane.xlu0 %941
        %v943 = vsel %vm897, %v896, 0.0
        %944 = vadd.xlane.f32.xlu0 %v943
        %v945 = vpop.xlane.xlu0 %944
        %s946 = smul.u32 %s25, 8
        %v947 = vlaneseq
        %v948 = vand.u32 %v947, 127
        %v949 = vstv %s946
        %v950 = vadd.s32 %v949, %v948
        %vm951 = vcmp.lt.s32.totalorder %v950, 12
        %v968 = vlaneseq
        %v969 = vshrl.u32 %v968, 7
        %v970 = vsub.s32 %v948, %v969
        %v971 = vrot.slane %v900, %v970
        %v972 = vlaneseq
        %v973 = vshrl.u32 %v972, 7
        %v974 = vsub.s32 %v948, %v973
        %v975 = vrot.slane %v903, %v974
        %v976 = vlaneseq
        %v977 = vshrl.u32 %v976, 7
        %v978 = vsub.s32 %v948, %v977
        %v979 = vrot.slane %v906, %v978
        %v980 = vlaneseq
        %v981 = vshrl.u32 %v980, 7
        %v982 = vsub.s32 %v948, %v981
        %v983 = vrot.slane %v909, %v982
        %v984 = vlaneseq
        %v985 = vshrl.u32 %v984, 7
        %v986 = vsub.s32 %v948, %v985
        %v987 = vrot.slane %v912, %v986
        %v988 = vlaneseq
        %v989 = vshrl.u32 %v988, 7
        %v990 = vsub.s32 %v948, %v989
        %v991 = vrot.slane %v915, %v990
        %v992 = vlaneseq
        %v993 = vshrl.u32 %v992, 7
        %v994 = vsub.s32 %v948, %v993
        %v995 = vrot.slane %v918, %v994
        %v996 = vlaneseq
        %v997 = vshrl.u32 %v996, 7
        %v998 = vsub.s32 %v948, %v997
        %v999 = vrot.slane %v921, %v998
        %v1000 = vlaneseq
        %v1001 = vshrl.u32 %v1000, 7
        %v1002 = vsub.s32 %v948, %v1001
        %v1003 = vrot.slane %v924, %v1002
        %v1004 = vlaneseq
        %v1005 = vshrl.u32 %v1004, 7
        %v1006 = vsub.s32 %v948, %v1005
        %v1007 = vrot.slane %v927, %v1006
        %v1008 = vlaneseq
        %v1009 = vshrl.u32 %v1008, 7
        %v1010 = vsub.s32 %v948, %v1009
        %v1011 = vrot.slane %v930, %v1010
        %v1012 = vlaneseq
        %v1013 = vshrl.u32 %v1012, 7
        %v1014 = vsub.s32 %v948, %v1013
        %v1015 = vrot.slane %v933, %v1014
        %v1016 = vlaneseq
        %v1017 = vshrl.u32 %v1016, 7
        %v1018 = vsub.s32 %v948, %v1017
        %v1019 = vrot.slane %v936, %v1018
        %v1020 = vlaneseq
        %v1021 = vshrl.u32 %v1020, 7
        %v1022 = vsub.s32 %v948, %v1021
        %v1023 = vrot.slane %v939, %v1022
        %v1024 = vlaneseq
        %v1025 = vshrl.u32 %v1024, 7
        %v1026 = vsub.s32 %v948, %v1025
        %v1027 = vrot.slane %v942, %v1026
        %v1028 = vlaneseq
        %v1029 = vshrl.u32 %v1028, 7
        %v1030 = vsub.s32 %v948, %v1029
        %v1031 = vrot.slane %v945, %v1030
        %vm1032 = vcmask 1041409
        %v1033 = vsel %vm1032, %v975, %v971
        %vm1034 = vcmask 1042434
        %v1035 = vsel %vm1034, %v979, %v1033
        %vm1036 = vcmask 1043459
        %v1037 = vsel %vm1036, %v983, %v1035
        %vm1038 = vcmask 1044484
        %v1039 = vsel %vm1038, %v987, %v1037
        %vm1040 = vcmask 1045509
        %v1041 = vsel %vm1040, %v991, %v1039
        %vm1042 = vcmask 1046534
        %v1043 = vsel %vm1042, %v995, %v1041
        %vm1044 = vcmask 1047559
        %v1045 = vsel %vm1044, %v999, %v1043
        %v1046 = vsel %vm1032, %v1007, %v1003
        %v1047 = vsel %vm1034, %v1011, %v1046
        %v1048 = vsel %vm1036, %v1015, %v1047
        %v1049 = vsel %vm1038, %v1019, %v1048
        %v1050 = vsel %vm1040, %v1023, %v1049
        %v1051 = vsel %vm1042, %v1027, %v1050
        %v1052 = vsel %vm1044, %v1031, %v1051
        %v1055 = vsel %vm951, %v1045, -1e+30
        %v1056 = vsel %vm951, %v1052, -1e+30
        %v1057 = vld [vmem:[#allocation3] sm:$0xff]
        %v1058 = vld [vmem:[#allocation3 + $0x8] sm:$0xff]
        %v1059 = vsel %vm897, %v1055, -inf
        %1060 = vmax.xlane.f32.xlu0 %v1059
        %v1061 = vpop.xlane.xlu0 %1060
        %v1062 = vsel %vm897, %v1056, -inf
        %1063 = vmax.xlane.f32.xlu0 %v1062
        %v1064 = vpop.xlane.xlu0 %1063
        %v1065 = vmax.f32 %v1057, %v1061
        %v1066 = vmax.f32 %v1058, %v1064
        %v1067 = vsub.f32 %v1057, %v1065
        %v1068 = vsub.f32 %v1058, %v1066
        %v1069 = vmul.f32 %v1067, 1.442695
        %v1070 = vpow.pop %v1069
        %v1071 = vmul.f32 %v1068, 1.442695
        %v1072 = vpow.pop %v1071
        %1074 = vset.pattern.permute.xlu0 0
        %1075 = vperm.xlu0 %1074, %v1065
        %v1076 = vpop.permute.xlu0 %1075
        %1079 = vset.pattern.permute.xlu0 0
        %1080 = vperm.xlu0 %1079, %v1066
        %v1081 = vpop.permute.xlu0 %1080
        %v1083 = vsub.f32 %v1055, %v1076
        %v1084 = vsub.f32 %v1056, %v1081
        %v1085 = vmul.f32 %v1083, 1.442695
        %v1086 = vpow.pop %v1085
        %v1087 = vmul.f32 %v1084, 1.442695
        %v1088 = vpow.pop %v1087
        %v1089 = vld [vmem:[#allocation4] sm:$0xff]
        %v1090 = vld [vmem:[#allocation4 + $0x8] sm:$0xff]
        %v1091 = vmul.f32 %v1070, %v1089
        %v1092 = vmul.f32 %v1072, %v1090
        %v1093 = vsel %vm897, %v1086, 0.0
        %1094 = vadd.xlane.f32.xlu0 %v1093
        %v1095 = vpop.xlane.xlu0 %1094
        %v1096 = vsel %vm897, %v1088, 0.0
        %1097 = vadd.xlane.f32.xlu0 %v1096
        %v1098 = vpop.xlane.xlu0 %1097
        %v1099 = vadd.f32 %v1091, %v1095
        %v1100 = vadd.f32 %v1092, %v1098
        %vm1101 = vcmask 7168
        %1102 = vst.msk [vmem:[#allocation4] sm:$0xff] %vm1101, %v1099
        %1103 = vst.msk [vmem:[#allocation4 + $0x8] sm:$0xff] %vm1101, %v1100
        %v1104 = vld [vmem:[#allocation5] sm:$0xff]
        %v1105 = vld [vmem:[#allocation5 + $0x8] sm:$0xff]
        %1107 = vset.pattern.permute.xlu0 0
        %1108 = vperm.xlu0 %1107, %v1070
        %v1109 = vpop.permute.xlu0 %1108
        %1112 = vset.pattern.permute.xlu0 0
        %1113 = vperm.xlu0 %1112, %v1072
        %v1114 = vpop.permute.xlu0 %1113
        %v1116 = vmul.f32 %v1109, %v1104
        %v1117 = vmul.f32 %v1114, %v1105
        %v1118 = vlaneseq
        %v1119 = vshrl.u32 %v1118, 7
        %v1120 = vsub.s32 0, %v1119
        %v1121 = vrot.slane %v1086, %v1120
        %1123 = vbcast.lane.b32.xlu0 %v1121, 256
        %v1124 = vpop.permute.xlu0 %1123
        %v1125 = vlaneseq
        %v1126 = vshrl.u32 %v1125, 7
        %v1127 = vsub.s32 1, %v1126
        %v1128 = vrot.slane %v1086, %v1127
        %1130 = vbcast.lane.b32.xlu0 %v1128, 256
        %v1131 = vpop.permute.xlu0 %1130
        %v1132 = vlaneseq
        %v1133 = vshrl.u32 %v1132, 7
        %v1134 = vsub.s32 2, %v1133
        %v1135 = vrot.slane %v1086, %v1134
        %1137 = vbcast.lane.b32.xlu0 %v1135, 256
        %v1138 = vpop.permute.xlu0 %1137
        %v1139 = vlaneseq
        %v1140 = vshrl.u32 %v1139, 7
        %v1141 = vsub.s32 3, %v1140
        %v1142 = vrot.slane %v1086, %v1141
        %1144 = vbcast.lane.b32.xlu0 %v1142, 256
        %v1145 = vpop.permute.xlu0 %1144
        %v1146 = vlaneseq
        %v1147 = vshrl.u32 %v1146, 7
        %v1148 = vsub.s32 4, %v1147
        %v1149 = vrot.slane %v1086, %v1148
        %1151 = vbcast.lane.b32.xlu0 %v1149, 256
        %v1152 = vpop.permute.xlu0 %1151
        %v1153 = vlaneseq
        %v1154 = vshrl.u32 %v1153, 7
        %v1155 = vsub.s32 5, %v1154
        %v1156 = vrot.slane %v1086, %v1155
        %1158 = vbcast.lane.b32.xlu0 %v1156, 256
        %v1159 = vpop.permute.xlu0 %1158
        %v1160 = vlaneseq
        %v1161 = vshrl.u32 %v1160, 7
        %v1162 = vsub.s32 6, %v1161
        %v1163 = vrot.slane %v1086, %v1162
        %1165 = vbcast.lane.b32.xlu0 %v1163, 256
        %v1166 = vpop.permute.xlu0 %1165
        %v1167 = vlaneseq
        %v1168 = vshrl.u32 %v1167, 7
        %v1169 = vsub.s32 7, %v1168
        %v1170 = vrot.slane %v1086, %v1169
        %1172 = vbcast.lane.b32.xlu0 %v1170, 256
        %v1173 = vpop.permute.xlu0 %1172
        %v1174 = vlaneseq
        %v1175 = vshrl.u32 %v1174, 7
        %v1176 = vsub.s32 0, %v1175
        %v1177 = vrot.slane %v1088, %v1176
        %1179 = vbcast.lane.b32.xlu0 %v1177, 256
        %v1180 = vpop.permute.xlu0 %1179
        %v1181 = vlaneseq
        %v1182 = vshrl.u32 %v1181, 7
        %v1183 = vsub.s32 1, %v1182
        %v1184 = vrot.slane %v1088, %v1183
        %1186 = vbcast.lane.b32.xlu0 %v1184, 256
        %v1187 = vpop.permute.xlu0 %1186
        %v1188 = vlaneseq
        %v1189 = vshrl.u32 %v1188, 7
        %v1190 = vsub.s32 2, %v1189
        %v1191 = vrot.slane %v1088, %v1190
        %1193 = vbcast.lane.b32.xlu0 %v1191, 256
        %v1194 = vpop.permute.xlu0 %1193
        %v1195 = vlaneseq
        %v1196 = vshrl.u32 %v1195, 7
        %v1197 = vsub.s32 3, %v1196
        %v1198 = vrot.slane %v1088, %v1197
        %1200 = vbcast.lane.b32.xlu0 %v1198, 256
        %v1201 = vpop.permute.xlu0 %1200
        %v1202 = vlaneseq
        %v1203 = vshrl.u32 %v1202, 7
        %v1204 = vsub.s32 4, %v1203
        %v1205 = vrot.slane %v1088, %v1204
        %1207 = vbcast.lane.b32.xlu0 %v1205, 256
        %v1208 = vpop.permute.xlu0 %1207
        %v1209 = vlaneseq
        %v1210 = vshrl.u32 %v1209, 7
        %v1211 = vsub.s32 5, %v1210
        %v1212 = vrot.slane %v1088, %v1211
        %1214 = vbcast.lane.b32.xlu0 %v1212, 256
        %v1215 = vpop.permute.xlu0 %1214
        %v1216 = vlaneseq
        %v1217 = vshrl.u32 %v1216, 7
        %v1218 = vsub.s32 6, %v1217
        %v1219 = vrot.slane %v1088, %v1218
        %1221 = vbcast.lane.b32.xlu0 %v1219, 256
        %v1222 = vpop.permute.xlu0 %1221
        %v1223 = vlaneseq
        %v1224 = vshrl.u32 %v1223, 7
        %v1225 = vsub.s32 7, %v1224
        %v1226 = vrot.slane %v1088, %v1225
        %1228 = vbcast.lane.b32.xlu0 %v1226, 256
        %v1229 = vpop.permute.xlu0 %1228
        %v1230 = vmul.f32 %v1124, %v651
        %v1231 = vmul.f32 %v1131, %v652
        %v1232 = vmul.f32 %v1138, %v653
        %v1233 = vmul.f32 %v1145, %v654
        %v1234 = vmul.f32 %v1152, %v655
        %v1235 = vmul.f32 %v1159, %v656
        %v1236 = vmul.f32 %v1166, %v657
        %v1237 = vmul.f32 %v1173, %v658
        %v1238 = vmul.f32 %v1180, %v659
        %v1239 = vmul.f32 %v1187, %v660
        %v1240 = vmul.f32 %v1194, %v661
        %v1241 = vmul.f32 %v1201, %v662
        %v1242 = vmul.f32 %v1208, %v663
        %v1243 = vmul.f32 %v1215, %v664
        %v1244 = vmul.f32 %v1222, %v665
        %v1245 = vmul.f32 %v1229, %v666
        %vm1246 = vcmask 130048
        %v1247 = vsel %vm1246, %v1230, 0.0
        %v1248 = vrot.slane %v1247, 4
        %v1249 = vadd.f32 %v1247, %v1248
        %v1250 = vrot.slane %v1249, 2
        %v1251 = vadd.f32 %v1249, %v1250
        %v1252 = vrot.slane %v1251, 1
        %v1253 = vadd.f32 %v1251, %v1252
        %v1254 = vsel %vm1246, %v1231, 0.0
        %v1255 = vrot.slane %v1254, 4
        %v1256 = vadd.f32 %v1254, %v1255
        %v1257 = vrot.slane %v1256, 2
        %v1258 = vadd.f32 %v1256, %v1257
        %v1259 = vrot.slane %v1258, 1
        %v1260 = vadd.f32 %v1258, %v1259
        %v1261 = vsel %vm1246, %v1232, 0.0
        %v1262 = vrot.slane %v1261, 4
        %v1263 = vadd.f32 %v1261, %v1262
        %v1264 = vrot.slane %v1263, 2
        %v1265 = vadd.f32 %v1263, %v1264
        %v1266 = vrot.slane %v1265, 1
        %v1267 = vadd.f32 %v1265, %v1266
        %v1268 = vsel %vm1246, %v1233, 0.0
        %v1269 = vrot.slane %v1268, 4
        %v1270 = vadd.f32 %v1268, %v1269
        %v1271 = vrot.slane %v1270, 2
        %v1272 = vadd.f32 %v1270, %v1271
        %v1273 = vrot.slane %v1272, 1
        %v1274 = vadd.f32 %v1272, %v1273
        %v1275 = vsel %vm1246, %v1234, 0.0
        %v1276 = vrot.slane %v1275, 4
        %v1277 = vadd.f32 %v1275, %v1276
        %v1278 = vrot.slane %v1277, 2
        %v1279 = vadd.f32 %v1277, %v1278
        %v1280 = vrot.slane %v1279, 1
        %v1281 = vadd.f32 %v1279, %v1280
        %v1282 = vsel %vm1246, %v1235, 0.0
        %v1283 = vrot.slane %v1282, 4
        %v1284 = vadd.f32 %v1282, %v1283
        %v1285 = vrot.slane %v1284, 2
        %v1286 = vadd.f32 %v1284, %v1285
        %v1287 = vrot.slane %v1286, 1
        %v1288 = vadd.f32 %v1286, %v1287
        %v1289 = vsel %vm1246, %v1236, 0.0
        %v1290 = vrot.slane %v1289, 4
        %v1291 = vadd.f32 %v1289, %v1290
        %v1292 = vrot.slane %v1291, 2
        %v1293 = vadd.f32 %v1291, %v1292
        %v1294 = vrot.slane %v1293, 1
        %v1295 = vadd.f32 %v1293, %v1294
        %v1296 = vsel %vm1246, %v1237, 0.0
        %v1297 = vrot.slane %v1296, 4
        %v1298 = vadd.f32 %v1296, %v1297
        %v1299 = vrot.slane %v1298, 2
        %v1300 = vadd.f32 %v1298, %v1299
        %v1301 = vrot.slane %v1300, 1
        %v1302 = vadd.f32 %v1300, %v1301
        %v1303 = vsel %vm1246, %v1238, 0.0
        %v1304 = vrot.slane %v1303, 4
        %v1305 = vadd.f32 %v1303, %v1304
        %v1306 = vrot.slane %v1305, 2
        %v1307 = vadd.f32 %v1305, %v1306
        %v1308 = vrot.slane %v1307, 1
        %v1309 = vadd.f32 %v1307, %v1308
        %v1310 = vsel %vm1246, %v1239, 0.0
        %v1311 = vrot.slane %v1310, 4
        %v1312 = vadd.f32 %v1310, %v1311
        %v1313 = vrot.slane %v1312, 2
        %v1314 = vadd.f32 %v1312, %v1313
        %v1315 = vrot.slane %v1314, 1
        %v1316 = vadd.f32 %v1314, %v1315
        %v1317 = vsel %vm1246, %v1240, 0.0
        %v1318 = vrot.slane %v1317, 4
        %v1319 = vadd.f32 %v1317, %v1318
        %v1320 = vrot.slane %v1319, 2
        %v1321 = vadd.f32 %v1319, %v1320
        %v1322 = vrot.slane %v1321, 1
        %v1323 = vadd.f32 %v1321, %v1322
        %v1324 = vsel %vm1246, %v1241, 0.0
        %v1325 = vrot.slane %v1324, 4
        %v1326 = vadd.f32 %v1324, %v1325
        %v1327 = vrot.slane %v1326, 2
        %v1328 = vadd.f32 %v1326, %v1327
        %v1329 = vrot.slane %v1328, 1
        %v1330 = vadd.f32 %v1328, %v1329
        %v1331 = vsel %vm1246, %v1242, 0.0
        %v1332 = vrot.slane %v1331, 4
        %v1333 = vadd.f32 %v1331, %v1332
        %v1334 = vrot.slane %v1333, 2
        %v1335 = vadd.f32 %v1333, %v1334
        %v1336 = vrot.slane %v1335, 1
        %v1337 = vadd.f32 %v1335, %v1336
        %v1338 = vsel %vm1246, %v1243, 0.0
        %v1339 = vrot.slane %v1338, 4
        %v1340 = vadd.f32 %v1338, %v1339
        %v1341 = vrot.slane %v1340, 2
        %v1342 = vadd.f32 %v1340, %v1341
        %v1343 = vrot.slane %v1342, 1
        %v1344 = vadd.f32 %v1342, %v1343
        %v1345 = vsel %vm1246, %v1244, 0.0
        %v1346 = vrot.slane %v1345, 4
        %v1347 = vadd.f32 %v1345, %v1346
        %v1348 = vrot.slane %v1347, 2
        %v1349 = vadd.f32 %v1347, %v1348
        %v1350 = vrot.slane %v1349, 1
        %v1351 = vadd.f32 %v1349, %v1350
        %v1352 = vsel %vm1246, %v1245, 0.0
        %v1353 = vrot.slane %v1352, 4
        %v1354 = vadd.f32 %v1352, %v1353
        %v1355 = vrot.slane %v1354, 2
        %v1356 = vadd.f32 %v1354, %v1355
        %v1357 = vrot.slane %v1356, 1
        %v1358 = vadd.f32 %v1356, %v1357
        %v1375 = vsel %vm1032, %v1260, %v1253
        %v1376 = vsel %vm1034, %v1267, %v1375
        %v1377 = vsel %vm1036, %v1274, %v1376
        %v1378 = vsel %vm1038, %v1281, %v1377
        %v1379 = vsel %vm1040, %v1288, %v1378
        %v1380 = vsel %vm1042, %v1295, %v1379
        %v1381 = vsel %vm1044, %v1302, %v1380
        %v1382 = vsel %vm1032, %v1316, %v1309
        %v1383 = vsel %vm1034, %v1323, %v1382
        %v1384 = vsel %vm1036, %v1330, %v1383
        %v1385 = vsel %vm1038, %v1337, %v1384
        %v1386 = vsel %vm1040, %v1344, %v1385
        %v1387 = vsel %vm1042, %v1351, %v1386
        %v1388 = vsel %vm1044, %v1358, %v1387
        %v1391 = vadd.f32 %v1116, %v1381
        %v1392 = vadd.f32 %v1117, %v1388
        %1393 = vst.msk [vmem:[#allocation5] sm:$0xff] %vm1246, %v1391
        %1394 = vst.msk [vmem:[#allocation5 + $0x8] sm:$0xff] %vm1246, %v1392
        %1395 = vst.msk [vmem:[#allocation3] sm:$0xff] %vm1101, %v1065
        %1396 = vst.msk [vmem:[#allocation3 + $0x8] sm:$0xff] %vm1101, %v1066
        %p1397 = scmp.eq.s32.totalorder %s25, 1
        // Predicated region
        $region141: #{tpu_custom_call.1} parent=127 // pred_check
          %p1398 = pneg %p1397
        $region142: #{tpu_custom_call.1} parent=127 // pred_check_branch
          %1400 = sbr.rel (%p1398) target = $region144
        $region143: #{tpu_custom_call.1} parent=127 // pred_region
          %v1401 = vld [vmem:[%s2] sm:$0xff]
          %v1402 = vld [vmem:[%s2 + $0x8] sm:$0xff]
          %v1403 = vld [vmem:[#allocation5] sm:$0xff]
          %v1404 = vld [vmem:[#allocation5 + $0x8] sm:$0xff]
          %v1405 = vld [vmem:[#allocation4] sm:$0xff]
          %v1406 = vld [vmem:[#allocation4 + $0x8] sm:$0xff]
          %1408 = vset.pattern.permute.xlu0 0
          %1409 = vperm.xlu0 %1408, %v1405
          %v1410 = vpop.permute.xlu0 %1409
          %1413 = vset.pattern.permute.xlu0 0
          %1414 = vperm.xlu0 %1413, %v1406
          %v1415 = vpop.permute.xlu0 %1414
          %v1417 = vrcp.pop %v1410
          %v1418 = vmul.f32 %v1403, %v1417
          %v1419 = vrcp.pop %v1415
          %v1420 = vmul.f32 %v1404, %v1419
          %v1421 = vpack.c.bf16 %v1402, %v1401
          %v1422 = vld [vmem:[%s5] sm:$0xf]
          %v1423 = vld [vmem:[%s5 + $0x4] sm:$0xf]
          %v1424 = vpack.c.bf16 %v1420, %v1418
          %v1425 = vld [vmem:[%s6] sm:$0xf]
          %v1426 = vld [vmem:[%s6 + $0x4] sm:$0xf]
          %v1429 = vunpack.c.l.b16 %v1425
          %v1430 = vunpack.c.l.b16 %v1426
          %v1431 = vpack.c.b16 %v1430, %v1429
          %v1434 = vsel %vm1246, %v1424, 0
          %1436 = vmatprep.subr.bf16.mxu0 0
          %1437 = vmatpush1.bf16.msra.mxu0 %v1431
          %1438 = vmatprep.subr.bf16.mxu0 0
          %1439 = vmatpush1.bf16.msra.mxu0 0
          %1440 = vmatprep.subr.bf16.mxu0 0
          %1441 = vmatpush1.bf16.msra.mxu0 0
          %1442 = vmatprep.subr.bf16.mxu0 0
          %1443 = vmatpush1.bf16.msra.mxu0 0
          %1444 = vmatprep.subr.bf16.mxu0 0
          %1445 = vmatpush1.bf16.msra.mxu0 0
          %1446 = vmatprep.subr.bf16.mxu0 0
          %1447 = vmatpush1.bf16.msra.mxu0 0
          %1448 = vmatprep.subr.bf16.mxu0 0
          %1449 = vmatpush1.bf16.msra.mxu0 0
          %1450 = vmatprep.subr.bf16.mxu0 0
          %1451 = vmatpush1.bf16.msra.mxu0 0
          %1452 = vmatprep.subr.bf16.mxu0 0
          %1453 = vmatpush1.bf16.msra.mxu0 0
          %1454 = vmatprep.subr.bf16.mxu0 0
          %1455 = vmatpush1.bf16.msra.mxu0 0
          %1456 = vmatprep.subr.bf16.mxu0 0
          %1457 = vmatpush1.bf16.msra.mxu0 0
          %1458 = vmatprep.subr.bf16.mxu0 0
          %1459 = vmatpush1.bf16.msra.mxu0 0
          %1460 = vmatprep.subr.bf16.mxu0 0
          %1461 = vmatpush1.bf16.msra.mxu0 0
          %1462 = vmatprep.subr.bf16.mxu0 0
          %1463 = vmatpush1.bf16.msra.mxu0 0
          %1464 = vmatprep.subr.bf16.mxu0 0
          %1465 = vmatpush1.bf16.msra.mxu0 0
          %1466 = vmatprep.subr.bf16.mxu0 0
          %1467 = vmatpush1.bf16.msra.mxu0 0
          %1468 = vmatprep.mubr.bf16.mxu0 0
          %1469 = vmatmul.mubr.bf16.gmra.mrb[0].mxu0 %v1434
          %v1470 = vpop.f32.mrb[0].mxu0
          %v1471 = vadd.f32 0.0, %v1470
          %v1472 = vpop.f32.mrb[0].mxu0
          %v1473 = vpop.f32.mrb[0].mxu0
          %v1474 = vadd.f32 0.0, %v1473
          %v1475 = vpop.f32.mrb[0].mxu0
          %1476 = vdwg.mxu0
          %v1479 = vunpack.c.l.b16 %v1422
          %v1480 = vunpack.c.l.b16 %v1423
          %v1481 = vpack.c.b16 %v1480, %v1479
          %v1484 = vsel %vm1246, %v1421, 0
          %1486 = vmatprep.subr.bf16.mxu0 0
          %1487 = vmatpush1.bf16.msra.mxu0 %v1481
          %1488 = vmatprep.subr.bf16.mxu0 0
          %1489 = vmatpush1.bf16.msra.mxu0 0
          %1490 = vmatprep.subr.bf16.mxu0 0
          %1491 = vmatpush1.bf16.msra.mxu0 0
          %1492 = vmatprep.subr.bf16.mxu0 0
          %1493 = vmatpush1.bf16.msra.mxu0 0
          %1494 = vmatprep.subr.bf16.mxu0 0
          %1495 = vmatpush1.bf16.msra.mxu0 0
          %1496 = vmatprep.subr.bf16.mxu0 0
          %1497 = vmatpush1.bf16.msra.mxu0 0
          %1498 = vmatprep.subr.bf16.mxu0 0
          %1499 = vmatpush1.bf16.msra.mxu0 0
          %1500 = vmatprep.subr.bf16.mxu0 0
          %1501 = vmatpush1.bf16.msra.mxu0 0
          %1502 = vmatprep.subr.bf16.mxu0 0
          %1503 = vmatpush1.bf16.msra.mxu0 0
          %1504 = vmatprep.subr.bf16.mxu0 0
          %1505 = vmatpush1.bf16.msra.mxu0 0
          %1506 = vmatprep.subr.bf16.mxu0 0
          %1507 = vmatpush1.bf16.msra.mxu0 0
          %1508 = vmatprep.subr.bf16.mxu0 0
          %1509 = vmatpush1.bf16.msra.mxu0 0
          %1510 = vmatprep.subr.bf16.mxu0 0
          %1511 = vmatpush1.bf16.msra.mxu0 0
          %1512 = vmatprep.subr.bf16.mxu0 0
          %1513 = vmatpush1.bf16.msra.mxu0 0
          %1514 = vmatprep.subr.bf16.mxu0 0
          %1515 = vmatpush1.bf16.msra.mxu0 0
          %1516 = vmatprep.subr.bf16.mxu0 0
          %1517 = vmatpush1.bf16.msra.mxu0 0
          %1518 = vmatprep.mubr.bf16.mxu0 0
          %1519 = vmatmul.mubr.bf16.gmra.mrb[0].mxu0 %v1484
          %v1520 = vpop.f32.mrb[0].mxu0
          %v1521 = vadd.f32 %v1471, %v1520
          %v1522 = vpop.f32.mrb[0].mxu0
          %v1523 = vpop.f32.mrb[0].mxu0
          %v1524 = vadd.f32 %v1474, %v1523
          %v1525 = vpop.f32.mrb[0].mxu0
          %1526 = vdwg.mxu0
          %v1527 = vld [vmem:[%s7] sm:$0x1]
          %v1529 = vlaneseq
          %v1530 = vshrl.u32 %v1529, 7
          %v1531 = vsub.s32 0, %v1530
          %v1532 = vrot.slane %v1527, %v1531
          %v1534 = vadd.f32 %v1521, %v1532
          %v1535 = vadd.f32 %v1524, %v1532
          %v1536 = vpack.c.bf16 %v582, %v581
          %v1537 = vld [vmem:[%s8] sm:$0xf]
          %v1538 = vld [vmem:[%s8 + $0x4] sm:$0xf]
          %v1539 = vld [vmem:[%s9] sm:$0x1]
          %v1541 = vlaneseq
          %v1542 = vshrl.u32 %v1541, 7
          %v1543 = vsub.s32 0, %v1542
          %v1544 = vrot.slane %v1539, %v1543
          %v1548 = vunpack.c.l.b16 %v1537
          %v1549 = vunpack.c.l.b16 %v1538
          %v1550 = vpack.c.b16 %v1549, %v1548
          %v1553 = vsel %vm1246, %v1536, 0
          %1555 = vmatprep.subr.bf16.mxu0 0
          %1556 = vmatpush1.bf16.msra.mxu0 %v1550
          %1557 = vmatprep.subr.bf16.mxu0 0
          %1558 = vmatpush1.bf16.msra.mxu0 0
          %1559 = vmatprep.subr.bf16.mxu0 0
          %1560 = vmatpush1.bf16.msra.mxu0 0
          %1561 = vmatprep.subr.bf16.mxu0 0
          %1562 = vmatpush1.bf16.msra.mxu0 0
          %1563 = vmatprep.subr.bf16.mxu0 0
          %1564 = vmatpush1.bf16.msra.mxu0 0
          %1565 = vmatprep.subr.bf16.mxu0 0
          %1566 = vmatpush1.bf16.msra.mxu0 0
          %1567 = vmatprep.subr.bf16.mxu0 0
          %1568 = vmatpush1.bf16.msra.mxu0 0
          %1569 = vmatprep.subr.bf16.mxu0 0
          %1570 = vmatpush1.bf16.msra.mxu0 0
          %1571 = vmatprep.subr.bf16.mxu0 0
          %1572 = vmatpush1.bf16.msra.mxu0 0
          %1573 = vmatprep.subr.bf16.mxu0 0
          %1574 = vmatpush1.bf16.msra.mxu0 0
          %1575 = vmatprep.subr.bf16.mxu0 0
          %1576 = vmatpush1.bf16.msra.mxu0 0
          %1577 = vmatprep.subr.bf16.mxu0 0
          %1578 = vmatpush1.bf16.msra.mxu0 0
          %1579 = vmatprep.subr.bf16.mxu0 0
          %1580 = vmatpush1.bf16.msra.mxu0 0
          %1581 = vmatprep.subr.bf16.mxu0 0
          %1582 = vmatpush1.bf16.msra.mxu0 0
          %1583 = vmatprep.subr.bf16.mxu0 0
          %1584 = vmatpush1.bf16.msra.mxu0 0
          %1585 = vmatprep.subr.bf16.mxu0 0
          %1586 = vmatpush1.bf16.msra.mxu0 0
          %1587 = vmatprep.mubr.bf16.mxu0 0
          %1588 = vmatmul.mubr.bf16.gmra.mrb[0].mxu0 %v1553
          %v1589 = vpop.f32.mrb[0].mxu0
          %v1590 = vadd.f32 %v1544, %v1589
          %v1591 = vpop.f32.mrb[0].mxu0
          %v1592 = vpop.f32.mrb[0].mxu0
          %v1593 = vadd.f32 %v1544, %v1592
          %v1594 = vpop.f32.mrb[0].mxu0
          %1595 = vdwg.mxu0
          %v1596 = vadd.f32 %v1534, %v1590
          %v1597 = vadd.f32 %v1535, %v1593
          %v1598 = vxor.u32 %v1596, 2147483648
          %v1599 = vxor.u32 %v1597, 2147483648
          %v1600 = vmul.f32 %v1598, 1.442695
          %v1601 = vpow.pop %v1600
          %v1602 = vmul.f32 %v1599, 1.442695
          %v1603 = vpow.pop %v1602
          %v1604 = vadd.f32 %v1601, 1.0
          %v1605 = vadd.f32 %v1603, 1.0
          %v1606 = vrcp.pop %v1604
          %v1607 = vmul.f32 1.0, %v1606
          %v1608 = vrcp.pop %v1605
          %v1609 = vmul.f32 1.0, %v1608
          %1612 = vrot.lane.b32.xlu0 %v1590, 96
          %v1613 = vpop.permute.xlu0 %1612
          %1614 = vrot.lane.b32.xlu0 %v1593, 96
          %v1615 = vpop.permute.xlu0 %1614
          %v1618 = vmul.f32 %v1607, %v1613
          %v1619 = vmul.f32 %v1609, %v1615
          %1622 = vrot.lane.b32.xlu0 %v1618, 32
          %v1623 = vpop.permute.xlu0 %1622
          %1624 = vrot.lane.b32.xlu0 %v1619, 32
          %v1625 = vpop.permute.xlu0 %1624
          %v1628 = vadd.f32 %v1534, %v1623
          %v1629 = vadd.f32 %v1535, %v1625
          %v1630 = vtanh.pop %v1628
          %v1631 = vtanh.pop %v1629
          %v1632 = vsub.f32 1.0, %v1607
          %v1633 = vsub.f32 1.0, %v1609
          %1636 = vrot.lane.b32.xlu0 %v1630, 112
          %v1637 = vpop.permute.xlu0 %1636
          %1638 = vrot.lane.b32.xlu0 %v1631, 112
          %v1639 = vpop.permute.xlu0 %1638
          %v1642 = vmul.f32 %v1632, %v1637
          %v1643 = vmul.f32 %v1633, %v1639
          %1646 = vrot.lane.b32.xlu0 %v581, 16
          %v1647 = vpop.permute.xlu0 %1646
          %1648 = vrot.lane.b32.xlu0 %v582, 16
          %v1649 = vpop.permute.xlu0 %1648
          %v1652 = vmul.f32 %v1607, %v1647
          %v1653 = vmul.f32 %v1609, %v1649
          %v1654 = vadd.f32 %v1642, %v1652
          %v1655 = vadd.f32 %v1643, %v1653
          %1658 = vrot.lane.b32.xlu0 %v1654, 112
          %v1659 = vpop.permute.xlu0 %1658
          %1660 = vrot.lane.b32.xlu0 %v1655, 112
          %v1661 = vpop.permute.xlu0 %1660
          %1664 = vst.msk [vmem:[#allocation8] sm:$0xff] %vm1246, %v1659
          %1665 = vst.msk [vmem:[#allocation8 + $0x8] sm:$0xff] %vm1246, %v1661
          %1668 = vrot.lane.b32.xlu0 %v1418, 16
          %v1669 = vpop.permute.xlu0 %1668
          %1670 = vrot.lane.b32.xlu0 %v1420, 16
          %v1671 = vpop.permute.xlu0 %1670
          %1676 = vrot.lane.b32.xlu0 %v1401, 32
          %v1677 = vpop.permute.xlu0 %1676
          %1678 = vrot.lane.b32.xlu0 %v1402, 32
          %v1679 = vpop.permute.xlu0 %1678
          %v1682 = vsel %vm1246, %v1659, %v1669
          %v1683 = vsel %vm1246, %v1661, %v1671
          %vm1684 = vcmask 261120
          %v1685 = vsel %vm1684, %v1682, %v1677
          %v1686 = vsel %vm1684, %v1683, %v1679
          %v1687 = vpack.c.bf16 %v1686, %v1685
          %v1689 = vunpack.c.l.b16 %v1687
          %v1690 = vunpack.c.h.b16 %v1687
          %v1691 = vpack.c.b16 %v1689, %v1689
          %v1692 = vpack.c.b16 %v1690, %v1690
          %vm1695 = vcmask 388096
          %1696 = vst.msk [vmem:[#allocation10] sm:$0xf] %vm1695, %v1691
          %1697 = vst.msk [vmem:[#allocation10 + $0x4] sm:$0xf] %vm1695, %v1692
        $region144: #{tpu_custom_call.1} parent=127 // pred_fallthru
          _
        // Predicated region
        $region145: #{tpu_custom_call.1} parent=127 // pred_check
          %p1698 = pneg %p258
        $region146: #{tpu_custom_call.1} parent=127 // pred_check_branch
          %1700 = sbr.rel (%p1698) target = $region148
        $region147: #{tpu_custom_call.1} parent=127 // pred_region
          %s1702 = ssub.s32 256, 256
          %1703 = vsyncadd [#allocation9], %s1702
          %s1704 = sshll.u32 [#allocation8], 4
          %s1705 = int_to_ptr.vmem [resolvable:$true] %s1704
          %1710 = dma.vmem_to_hbm [thread:$0]  %s1705, 256, %s10, [#allocation9], 128, 128, 8
        $region148: #{tpu_custom_call.1} parent=127 // pred_fallthru
          _
        // Predicated region
        $region149: #{tpu_custom_call.1} parent=127 // pred_check
          %p1711 = pneg %p279
        $region150: #{tpu_custom_call.1} parent=127 // pred_check_branch
          %1713 = sbr.rel (%p1711) target = $region152
        $region151: #{tpu_custom_call.1} parent=127 // pred_region
          %s1715 = ssub.s32 128, 128
          %1716 = vsyncadd [#allocation11], %s1715
          %s1717 = sshll.u32 [#allocation10], 4
          %s1718 = int_to_ptr.vmem [resolvable:$true] %s1717
          %1723 = dma.vmem_to_hbm [thread:$0]  %s1718, 128, %s11, [#allocation11], 64, 64, 4
        $region152: #{tpu_custom_call.1} parent=127 // pred_fallthru
          _
        // Predicated region
        $region153: #{tpu_custom_call.1} parent=127 // pred_check
          %p1724 = pneg %p258
        $region154: #{tpu_custom_call.1} parent=127 // pred_check_branch
          %1726 = sbr.rel (%p1724) target = $region156
        $region155: #{tpu_custom_call.1} parent=127 // pred_region
          %1727 = dma.done [#allocation9], 256
        $region156: #{tpu_custom_call.1} parent=127 // pred_fallthru
          _
        // Predicated region
        $region157: #{tpu_custom_call.1} parent=127 // pred_check
          %p1728 = pneg %p279
        $region158: #{tpu_custom_call.1} parent=127 // pred_check_branch
          %1730 = sbr.rel (%p1728) target = $region160
        $region159: #{tpu_custom_call.1} parent=127 // pred_region
          %1731 = dma.done [#allocation11], 128
        $region160: #{tpu_custom_call.1} parent=127 // pred_fallthru
          _
      $region128: #{tpu_custom_call.1} parent=5 // pred_fallthru
        _
      %p1732 = scmp.le.s32.totalorder 2, %s20
      // Predicated region
      $region161: #{tpu_custom_call.1} parent=5 // pred_check
        %p1733 = pneg %p1732
      $region162: #{tpu_custom_call.1} parent=5 // pred_check_branch
        %1735 = sbr.rel (%p1733) target = $region164
      $region163: #{tpu_custom_call.1} parent=5 // pred_region
        %s1736 = ssub.s32 %s20, 2
      $region164: #{tpu_custom_call.1} parent=5 // pred_fallthru
        _
    $region6: #{tpu_custom_call.1} parent=1 // loop_footer
      %s24 = sadd.s32 1, %s20
    $region7: #{tpu_custom_call.1} parent=1 // loop_footer_branch
      %19 = sbr.rel target = $region3
    $region8: #{tpu_custom_call.1} parent=1 // loop_exit
      _
    %1737 = vsyncpa [#allocation9], 1
    %s1738 = scalar_lea.sflag [#allocation9], 1
    %1739 = vsyncpa %s1738, 1
    %1740 = vsyncpa [#allocation11], 1

</llo_original>
